<compile_context>
chip_gen: v7x
topology: tpu7x:2x2x1
jax: 0.10.0
libtpu: 0.0.40
codegen_flags: <defaults>
</compile_context>

<pallas_src>
import functools
import math

import jax
import jax.numpy as jnp
from jax.experimental import pallas as pl
from jax.experimental.pallas import tpu as pltpu

_SUBLANE = 8
_LANE = 128
_MIB = 1024 * 1024


def _round_up(x, m):
    return ((x + m - 1) // m) * m


def _padded_bytes(a):
    """VMEM footprint of a 2-D array after (8, 128) tile padding."""
    r, c = a.shape
    return _round_up(r, _SUBLANE) * _round_up(c, _LANE) * a.dtype.itemsize


# ----------------------------- Pallas kernels ------------------------------ #

def _vision_kernel(x_ref, wv_ref, bv_ref, wi_ref, bi_ref, wl_ref, bl_ref, o_ref):
    """4D path: vision_projection -> input_projection -> linear, fused in VMEM."""
    cdt = wi_ref.dtype                      # compute dtype (fp32 or bf16 weights)
    h = jnp.dot(x_ref[...], wv_ref[...], preferred_element_type=jnp.float32)
    h = (h + bv_ref[...]).astype(cdt)
    h = jnp.dot(h, wi_ref[...], preferred_element_type=jnp.float32)
    h = (h + bi_ref[...]).astype(cdt)
    out = jnp.dot(h, wl_ref[...], preferred_element_type=jnp.float32) + bl_ref[...]
    o_ref[...] = out.astype(o_ref.dtype)


def _seq_kernel(x_ref, wi_ref, bi_ref, wl_ref, bl_ref, o_ref):
    """2D / 3D path: input_projection -> linear, fused in VMEM."""
    cdt = wi_ref.dtype
    h = jnp.dot(x_ref[...], wi_ref[...], preferred_element_type=jnp.float32)
    h = (h + bi_ref[...]).astype(cdt)
    out = jnp.dot(h, wl_ref[...], preferred_element_type=jnp.float32) + bl_ref[...]
    o_ref[...] = out.astype(o_ref.dtype)


# --------------------------- tiling / VMEM planning ------------------------- #

def _plan_tiles(n_rows, in_dim, dim, resident_bytes, itemsize,
                tm_max=2048, budget_bytes=48 * _MIB):
    """Pick a row-tile size and a VMEM limit for the fused kernel."""
    lane_in = _round_up(in_dim, _LANE)
    lane_out = _round_up(dim, _LANE)

    def vmem_need(tm):
        x_tiles = 2 * tm * lane_in * itemsize     # double-buffered input tile
        o_tiles = 2 * tm * lane_out * itemsize    # double-buffered output tile
        scratch = 2 * tm * lane_out * 4           # fp32 intermediates in the body
        return x_tiles + o_tiles + scratch + resident_bytes

    tm = tm_max
    # Give megacore / both v7x TensorCores >= 2 grid steps when there is enough work.
    if n_rows >= 1024:
        tm = min(tm, max(512, _round_up(pl.cdiv(n_rows, 2), _SUBLANE)))
    # Shrink until the working set fits the (v7x-safe) VMEM budget.
    while tm > 256 and vmem_need(tm) > budget_bytes:
        tm //= 2
    tm = max(_SUBLANE, _round_up(tm, _SUBLANE))
    # If the whole row matrix is smaller than one tile, use it as a single block
    # (block dim == full array dim is always a legal TPU block shape).
    tm = min(tm, max(n_rows, 1))

    vmem_limit = int(max(32 * _MIB, min(vmem_need(tm) + 8 * _MIB, 56 * _MIB)))
    return tm, vmem_limit


def _run_rows(kernel, rows, weight_args, dim, tm_max=2048):
    """Tile the (N, in_dim) row matrix along rows and run the fused kernel."""
    n, in_dim = rows.shape
    resident_bytes = sum(_padded_bytes(w) for w in weight_args)
    tm, vmem_limit = _plan_tiles(n, in_dim, dim, resident_bytes,
                                 rows.dtype.itemsize, tm_max=tm_max)

    # Whole-array, single-buffered VMEM residency for the small weights/biases:
    # their block never changes across the grid, so double-buffering them would
    # only waste VMEM (matters most on v7x's 64 MiB).
    w_specs = [pl.BlockSpec(memory_space=pltpu.MemorySpace.VMEM)
               for _ in weight_args]

    return pl.pallas_call(
        kernel,
        out_shape=jax.ShapeDtypeStruct((n, dim), rows.dtype),
        grid=(pl.cdiv(n, tm),),
        in_specs=[pl.BlockSpec((tm, in_dim), lambda i: (i, 0))] + w_specs,
        out_specs=pl.BlockSpec((tm, dim), lambda i: (i, 0)),
        compiler_params=pltpu.CompilerParams(
            dimension_semantics=("parallel",),
            vmem_limit_bytes=vmem_limit,
        ),
    )(rows, *weight_args)


# ------------------------------- forward pass ------------------------------- #

def base_processor_forward(x, params, *, tm_max=2048):
    """JAX/Pallas equivalent of BaseProcessor.forward."""
    dim = params["wi"].shape[0]

    if x.ndim == 2:                       # (B, dim) -> (B, 1, dim), like unsqueeze(1)
        x = x[:, None, :]

    if x.ndim == 4:                       # NCHW vision input, C == 3
        b, c, h, w = x.shape
        seq = h * w
        # NCHW -> NHWC rows (single fused XLA pass).
        rows = jnp.transpose(x, (0, 2, 3, 1)).reshape(b * seq, c)
        args = (params["wv"], params["bv"], params["wi"], params["bi"],
                params["wl"], params["bl"])
        out = _run_rows(_vision_kernel, rows, args, dim, tm_max=tm_max)
    else:                                 # (B, S, dim)
        b, seq, _ = x.shape
        rows = x.reshape(b * seq, x.shape[-1])
        args = (params["wi"], params["bi"], params["wl"], params["bl"])
        out = _run_rows(_seq_kernel, rows, args, dim, tm_max=tm_max)

    return out.reshape(b, seq, dim)


# ------------------------------ parameter init ------------------------------ #

def init_params(dim, key, dtype=jnp.float32):
    """PyTorch-Linear-style init.  Weights stored as (in_features, out_features)
    so the kernel does x @ W; biases are (1, out_features).
    Pass dtype=jnp.bfloat16 on v6e/v7x to halve HBM/VMEM traffic (kernel still
    accumulates in fp32)."""
    ks = jax.random.split(key, 6)

    def linear(kw, kb, fan_in, fan_out):
        bound = 1.0 / math.sqrt(fan_in)
        w = jax.random.uniform(kw, (fan_in, fan_out), jnp.float32, -bound, bound)
        b = jax.random.uniform(kb, (1, fan_out), jnp.float32, -bound, bound)
        return w.astype(dtype), b.astype(dtype)

    wi, bi = linear(ks[0], ks[1], dim, dim)   # input_projection
    wl, bl = linear(ks[2], ks[3], dim, dim)   # linear
    wv, bv = linear(ks[4], ks[5], 3, dim)     # vision_projection
    return dict(wi=wi, bi=bi, wl=wl, bl=bl, wv=wv, bv=bv)


def _reference_forward(x, p):
    """Pure-JAX reference mirroring the PyTorch module."""
    pr = jax.lax.Precision.HIGHEST
    if x.ndim == 2:
        x = x[:, None, :]
    if x.ndim == 4:
        b, c, h, w = x.shape
        x = jnp.transpose(x, (0, 2, 3, 1)).reshape(b, h * w, c)
        x = jnp.dot(x, p["wv"], precision=pr) + p["bv"]
    x = jnp.dot(x, p["wi"], precision=pr) + p["bi"]
    return jnp.dot(x, p["wl"], precision=pr) + p["bl"]


# ----------------------------------- main ----------------------------------- #

if __name__ == "__main__":
    key = jax.random.PRNGKey(0)
    k_param, k_img, k_seq, k_vec = jax.random.split(key, 4)

    dim = 128   # multiple of 128 -> lane-dense output stores (dim < 128 also works)
    params = init_params(dim, k_param)

    # 4D vision input: NCHW with C=3 (vision_projection is Linear(3, dim)).
    x_img = jax.random.normal(k_img, (2, 3, 16, 16), jnp.float32)
    # 3D sequence input: (batch, seq, dim).
    x_seq = jax.random.normal(k_seq, (2, 8, dim), jnp.float32)
    # 2D input: (batch, dim)  -> module returns (batch, 1, dim).
    x_vec = jax.random.normal(k_vec, (2, dim), jnp.float32)

    fwd = jax.jit(functools.partial(base_processor_forward, params=params))

    out_img = jax.block_until_ready(fwd(x_img))
    out_seq = jax.block_until_ready(fwd(x_seq))
    out_vec = jax.block_until_ready(fwd(x_vec))

    ref_img = _reference_forward(x_img, params)
    ref_seq = _reference_forward(x_seq, params)
    ref_vec = _reference_forward(x_vec, params)

    assert out_img.shape == (2, 16 * 16, dim)
    assert out_seq.shape == (2, 8, dim)
    assert out_vec.shape == (2, 1, dim)
    assert jnp.allclose(out_img, ref_img, atol=1e-3, rtol=1e-3)
    assert jnp.allclose(out_seq, ref_seq, atol=1e-3, rtol=1e-3)
    assert jnp.allclose(out_vec, ref_vec, atol=1e-3, rtol=1e-3)

    print("KERNEL_OK")
</pallas_src>

<mosaic_0001>
module attributes {stable_mosaic.version = 11 : i64} {
  func.func @_vision_kernel(%arg0: i32, %arg1: memref<512x3xf32, #tpu.memory_space<vmem>>, %arg2: memref<3x128xf32, #tpu.memory_space<vmem>>, %arg3: memref<1x128xf32, #tpu.memory_space<vmem>>, %arg4: memref<128x128xf32, #tpu.memory_space<vmem>>, %arg5: memref<1x128xf32, #tpu.memory_space<vmem>>, %arg6: memref<128x128xf32, #tpu.memory_space<vmem>>, %arg7: memref<1x128xf32, #tpu.memory_space<vmem>>, %arg8: memref<512x128xf32, #tpu.memory_space<vmem>>) attributes {dimension_semantics = [#tpu.dimension_semantics<parallel>], iteration_bounds = array<i64: 1>, scalar_prefetch = 0 : i64, scratch_operands = 0 : i64, tpu.core_type = #tpu.core_type<tc>, window_params = [{transform_indices = @transform_0, window_bounds = array<i64: 512, 3>}, {pipeline_mode = #tpu.pipeline_mode<synchronous>, transform_indices = @transform_1, window_bounds = array<i64: 3, 128>}, {pipeline_mode = #tpu.pipeline_mode<synchronous>, transform_indices = @transform_2, window_bounds = array<i64: 1, 128>}, {pipeline_mode = #tpu.pipeline_mode<synchronous>, transform_indices = @transform_3, window_bounds = array<i64: 128, 128>}, {pipeline_mode = #tpu.pipeline_mode<synchronous>, transform_indices = @transform_4, window_bounds = array<i64: 1, 128>}, {pipeline_mode = #tpu.pipeline_mode<synchronous>, transform_indices = @transform_5, window_bounds = array<i64: 128, 128>}, {pipeline_mode = #tpu.pipeline_mode<synchronous>, transform_indices = @transform_6, window_bounds = array<i64: 1, 128>}, {transform_indices = @transform_7, window_bounds = array<i64: 512, 128>}]} {
    %c0 = arith.constant 0 : index
    %c0_0 = arith.constant 0 : index
    %0 = vector.load %arg1[%c0, %c0_0] : memref<512x3xf32, #tpu.memory_space<vmem>>, vector<512x3xf32>
    %c0_1 = arith.constant 0 : index
    %c0_2 = arith.constant 0 : index
    %1 = vector.load %arg2[%c0_1, %c0_2] : memref<3x128xf32, #tpu.memory_space<vmem>>, vector<3x128xf32>
    %cst = arith.constant dense<0.000000e+00> : vector<512x128xf32>
    %2 = tpu.matmul %0, %1, %cst {dimension_numbers = #tpu.dot_dimension_numbers<[1], [0], [0], [1], [0, 0, 1, 1], [], []>} : vector<512x3xf32>, vector<3x128xf32>, vector<512x128xf32> -> vector<512x128xf32>
    %c0_3 = arith.constant 0 : index
    %c0_4 = arith.constant 0 : index
    %3 = vector.load %arg3[%c0_3, %c0_4] : memref<1x128xf32, #tpu.memory_space<vmem>>, vector<1x128xf32>
    %4 = vector.broadcast %3 : vector<1x128xf32> to vector<512x128xf32>
    %5 = arith.addf %2, %4 : vector<512x128xf32>
    %c0_5 = arith.constant 0 : index
    %c0_6 = arith.constant 0 : index
    %6 = vector.load %arg4[%c0_5, %c0_6] : memref<128x128xf32, #tpu.memory_space<vmem>>, vector<128x128xf32>
    %cst_7 = arith.constant dense<0.000000e+00> : vector<512x128xf32>
    %7 = tpu.matmul %5, %6, %cst_7 {dimension_numbers = #tpu.dot_dimension_numbers<[1], [0], [0], [1], [0, 0, 1, 1], [], []>} : vector<512x128xf32>, vector<128x128xf32>, vector<512x128xf32> -> vector<512x128xf32>
    %c0_8 = arith.constant 0 : index
    %c0_9 = arith.constant 0 : index
    %8 = vector.load %arg5[%c0_8, %c0_9] : memref<1x128xf32, #tpu.memory_space<vmem>>, vector<1x128xf32>
    %9 = vector.broadcast %8 : vector<1x128xf32> to vector<512x128xf32>
    %10 = arith.addf %7, %9 : vector<512x128xf32>
    %c0_10 = arith.constant 0 : index
    %c0_11 = arith.constant 0 : index
    %11 = vector.load %arg6[%c0_10, %c0_11] : memref<128x128xf32, #tpu.memory_space<vmem>>, vector<128x128xf32>
    %cst_12 = arith.constant dense<0.000000e+00> : vector<512x128xf32>
    %12 = tpu.matmul %10, %11, %cst_12 {dimension_numbers = #tpu.dot_dimension_numbers<[1], [0], [0], [1], [0, 0, 1, 1], [], []>} : vector<512x128xf32>, vector<128x128xf32>, vector<512x128xf32> -> vector<512x128xf32>
    %c0_13 = arith.constant 0 : index
    %c0_14 = arith.constant 0 : index
    %13 = vector.load %arg7[%c0_13, %c0_14] : memref<1x128xf32, #tpu.memory_space<vmem>>, vector<1x128xf32>
    %14 = vector.broadcast %13 : vector<1x128xf32> to vector<512x128xf32>
    %15 = arith.addf %12, %14 : vector<512x128xf32>
    %c0_15 = arith.constant 0 : index
    %c0_16 = arith.constant 0 : index
    %16 = vector.load %arg8[%c0_15, %c0_16] : memref<512x128xf32, #tpu.memory_space<vmem>>, vector<512x128xf32>
    tpu.vector_store %arg8[%c0_15, %c0_16], %15 {strides = array<i32>} : memref<512x128xf32, #tpu.memory_space<vmem>>, vector<512x128xf32>,
    return
  }
  func.func @transform_0(%arg0: i32) -> (i32, i32) {
    %c0_i32 = arith.constant 0 : i32
    %c0_i32_0 = arith.constant 0 : i32
    return %arg0, %c0_i32 : i32, i32
  }
  func.func @transform_1(%arg0: i32) -> (i32, i32) {
    %c0_i32 = arith.constant 0 : i32
    %c0_i32_0 = arith.constant 0 : i32
    %c0_i32_1 = arith.constant 0 : i32
    return %c0_i32, %c0_i32_0 : i32, i32
  }
  func.func @transform_2(%arg0: i32) -> (i32, i32) {
    %c0_i32 = arith.constant 0 : i32
    %c0_i32_0 = arith.constant 0 : i32
    %c0_i32_1 = arith.constant 0 : i32
    return %c0_i32, %c0_i32_0 : i32, i32
  }
  func.func @transform_3(%arg0: i32) -> (i32, i32) {
    %c0_i32 = arith.constant 0 : i32
    %c0_i32_0 = arith.constant 0 : i32
    %c0_i32_1 = arith.constant 0 : i32
    return %c0_i32, %c0_i32_0 : i32, i32
  }
  func.func @transform_4(%arg0: i32) -> (i32, i32) {
    %c0_i32 = arith.constant 0 : i32
    %c0_i32_0 = arith.constant 0 : i32
    %c0_i32_1 = arith.constant 0 : i32
    return %c0_i32, %c0_i32_0 : i32, i32
  }
  func.func @transform_5(%arg0: i32) -> (i32, i32) {
    %c0_i32 = arith.constant 0 : i32
    %c0_i32_0 = arith.constant 0 : i32
    %c0_i32_1 = arith.constant 0 : i32
    return %c0_i32, %c0_i32_0 : i32, i32
  }
  func.func @transform_6(%arg0: i32) -> (i32, i32) {
    %c0_i32 = arith.constant 0 : i32
    %c0_i32_0 = arith.constant 0 : i32
    %c0_i32_1 = arith.constant 0 : i32
    return %c0_i32, %c0_i32_0 : i32, i32
  }
  func.func @transform_7(%arg0: i32) -> (i32, i32) {
    %c0_i32 = arith.constant 0 : i32
    %c0_i32_0 = arith.constant 0 : i32
    return %arg0, %c0_i32 : i32, i32
  }
}

</mosaic_0001>

<llo_original>
// kernel: base_processor_forward.1
$region0: #{base_processor_forward.1}
  #allocation0 [shape = 'u32[]', space=smem, size = 0x4, offset = 0x4, fixed_abs, tag = 'smem constant byte address 0x4 - core index']
  #allocation1 [shape = 'u32[144,128]{1,0:T(1,128)}', space=vmem, size = 0x12000, scoped, tag = 'internal scratch']
  %s0 = inlined_call_operand.vmem [shape: f32[512,3], index: 0, kind: input, shape index: {}]
  %s1 = inlined_call_operand.vmem [shape: f32[3,128], index: 1, kind: input, shape index: {}]
  %s2 = inlined_call_operand.vmem [shape: f32[1,128], index: 2, kind: input, shape index: {}]
  %s3 = inlined_call_operand.vmem [shape: f32[128,128], index: 3, kind: input, shape index: {}]
  %s4 = inlined_call_operand.vmem [shape: f32[1,128], index: 4, kind: input, shape index: {}]
  %s5 = inlined_call_operand.vmem [shape: f32[128,128], index: 5, kind: input, shape index: {}]
  %s6 = inlined_call_operand.vmem [shape: f32[1,128], index: 6, kind: input, shape index: {}]
  %s7 = inlined_call_operand.hbm [shape: f32[512,128], index: 7, kind: output, shape index: {}]
  %s8 = sld [smem:[#allocation0]]
  $region38: #{base_processor_forward.1} parent=0
    _
  %s10 = ssub.s32 1, %s8
  %s11 = scalar_select 0, %s10, %s8
  $region1: #{base_processor_forward.1} parent=0
    #allocation2 [shape = 'u8[262144]{0}', space=vmem, size = 0x40000, scoped, tag = 'output window, operand 0, single buffered']
    #allocation3 [shape = 's32[1]{0}', space=sflag, size = 0x4, scoped, tag = 'scoped memory for base_processor_forward.1']
    %12 = vsyncpa [#allocation3], 0
    // Predicated region
    $region2: #{base_processor_forward.1} parent=1 // pred_check
      _
    $region3: #{base_processor_forward.1} parent=1 // pred_check_branch
      %14 = sbr.rel (0) target = $region5
    $region4: #{base_processor_forward.1} parent=1 // pred_region
      _
    $region5: #{base_processor_forward.1} parent=1 // pred_fallthru
      _
    // Predicated region
    $region6: #{base_processor_forward.1} parent=1 // pred_check
      _
    $region7: #{base_processor_forward.1} parent=1 // pred_check_branch
      %16 = sbr.rel (0) target = $region9
    $region8: #{base_processor_forward.1} parent=1 // pred_region
      _
    $region9: #{base_processor_forward.1} parent=1 // pred_fallthru
      _
    // Predicated region
    $region10: #{base_processor_forward.1} parent=1 // pred_check
      _
    $region11: #{base_processor_forward.1} parent=1 // pred_check_branch
      %18 = sbr.rel (0) target = $region13
    $region12: #{base_processor_forward.1} parent=1 // pred_region
      _
    $region13: #{base_processor_forward.1} parent=1 // pred_fallthru
      _
    // Predicated region
    $region14: #{base_processor_forward.1} parent=1 // pred_check
      _
    $region15: #{base_processor_forward.1} parent=1 // pred_check_branch
      %20 = sbr.rel (0) target = $region17
    $region16: #{base_processor_forward.1} parent=1 // pred_region
      _
    $region17: #{base_processor_forward.1} parent=1 // pred_fallthru
      _
    // Predicated region
    $region18: #{base_processor_forward.1} parent=1 // pred_check
      _
    $region19: #{base_processor_forward.1} parent=1 // pred_check_branch
      %22 = sbr.rel (0) target = $region21
    $region20: #{base_processor_forward.1} parent=1 // pred_region
      _
    $region21: #{base_processor_forward.1} parent=1 // pred_fallthru
      _
    // Predicated region
    $region22: #{base_processor_forward.1} parent=1 // pred_check
      _
    $region23: #{base_processor_forward.1} parent=1 // pred_check_branch
      %24 = sbr.rel (0) target = $region25
    $region24: #{base_processor_forward.1} parent=1 // pred_region
      _
    $region25: #{base_processor_forward.1} parent=1 // pred_fallthru
      _
    // Predicated region
    $region26: #{base_processor_forward.1} parent=1 // pred_check
      _
    $region27: #{base_processor_forward.1} parent=1 // pred_check_branch
      %26 = sbr.rel (0) target = $region29
    $region28: #{base_processor_forward.1} parent=1 // pred_region
      _
    $region29: #{base_processor_forward.1} parent=1 // pred_fallthru
      _
    %v27 = vld [vmem:[%s0] sm:$0xff]
    %v28 = vld [vmem:[%s0 + $0x8] sm:$0xff]
    %v29 = vld [vmem:[%s0 + $0x10] sm:$0xff]
    %v30 = vld [vmem:[%s0 + $0x18] sm:$0xff]
    %v31 = vld [vmem:[%s0 + $0x20] sm:$0xff]
    %v32 = vld [vmem:[%s0 + $0x28] sm:$0xff]
    %v33 = vld [vmem:[%s0 + $0x30] sm:$0xff]
    %v34 = vld [vmem:[%s0 + $0x38] sm:$0xff]
    %v35 = vld [vmem:[%s0 + $0x40] sm:$0xff]
    %v36 = vld [vmem:[%s0 + $0x48] sm:$0xff]
    %v37 = vld [vmem:[%s0 + $0x50] sm:$0xff]
    %v38 = vld [vmem:[%s0 + $0x58] sm:$0xff]
    %v39 = vld [vmem:[%s0 + $0x60] sm:$0xff]
    %v40 = vld [vmem:[%s0 + $0x68] sm:$0xff]
    %v41 = vld [vmem:[%s0 + $0x70] sm:$0xff]
    %v42 = vld [vmem:[%s0 + $0x78] sm:$0xff]
    %v43 = vld [vmem:[%s0 + $0x80] sm:$0xff]
    %v44 = vld [vmem:[%s0 + $0x88] sm:$0xff]
    %v45 = vld [vmem:[%s0 + $0x90] sm:$0xff]
    %v46 = vld [vmem:[%s0 + $0x98] sm:$0xff]
    %v47 = vld [vmem:[%s0 + $0xa0] sm:$0xff]
    %v48 = vld [vmem:[%s0 + $0xa8] sm:$0xff]
    %v49 = vld [vmem:[%s0 + $0xb0] sm:$0xff]
    %v50 = vld [vmem:[%s0 + $0xb8] sm:$0xff]
    %v51 = vld [vmem:[%s0 + $0xc0] sm:$0xff]
    %v52 = vld [vmem:[%s0 + $0xc8] sm:$0xff]
    %v53 = vld [vmem:[%s0 + $0xd0] sm:$0xff]
    %v54 = vld [vmem:[%s0 + $0xd8] sm:$0xff]
    %v55 = vld [vmem:[%s0 + $0xe0] sm:$0xff]
    %v56 = vld [vmem:[%s0 + $0xe8] sm:$0xff]
    %v57 = vld [vmem:[%s0 + $0xf0] sm:$0xff]
    %v58 = vld [vmem:[%s0 + $0xf8] sm:$0xff]
    %v59 = vld [vmem:[%s0 + $0x100] sm:$0xff]
    %v60 = vld [vmem:[%s0 + $0x108] sm:$0xff]
    %v61 = vld [vmem:[%s0 + $0x110] sm:$0xff]
    %v62 = vld [vmem:[%s0 + $0x118] sm:$0xff]
    %v63 = vld [vmem:[%s0 + $0x120] sm:$0xff]
    %v64 = vld [vmem:[%s0 + $0x128] sm:$0xff]
    %v65 = vld [vmem:[%s0 + $0x130] sm:$0xff]
    %v66 = vld [vmem:[%s0 + $0x138] sm:$0xff]
    %v67 = vld [vmem:[%s0 + $0x140] sm:$0xff]
    %v68 = vld [vmem:[%s0 + $0x148] sm:$0xff]
    %v69 = vld [vmem:[%s0 + $0x150] sm:$0xff]
    %v70 = vld [vmem:[%s0 + $0x158] sm:$0xff]
    %v71 = vld [vmem:[%s0 + $0x160] sm:$0xff]
    %v72 = vld [vmem:[%s0 + $0x168] sm:$0xff]
    %v73 = vld [vmem:[%s0 + $0x170] sm:$0xff]
    %v74 = vld [vmem:[%s0 + $0x178] sm:$0xff]
    %v75 = vld [vmem:[%s0 + $0x180] sm:$0xff]
    %v76 = vld [vmem:[%s0 + $0x188] sm:$0xff]
    %v77 = vld [vmem:[%s0 + $0x190] sm:$0xff]
    %v78 = vld [vmem:[%s0 + $0x198] sm:$0xff]
    %v79 = vld [vmem:[%s0 + $0x1a0] sm:$0xff]
    %v80 = vld [vmem:[%s0 + $0x1a8] sm:$0xff]
    %v81 = vld [vmem:[%s0 + $0x1b0] sm:$0xff]
    %v82 = vld [vmem:[%s0 + $0x1b8] sm:$0xff]
    %v83 = vld [vmem:[%s0 + $0x1c0] sm:$0xff]
    %v84 = vld [vmem:[%s0 + $0x1c8] sm:$0xff]
    %v85 = vld [vmem:[%s0 + $0x1d0] sm:$0xff]
    %v86 = vld [vmem:[%s0 + $0x1d8] sm:$0xff]
    %v87 = vld [vmem:[%s0 + $0x1e0] sm:$0xff]
    %v88 = vld [vmem:[%s0 + $0x1e8] sm:$0xff]
    %v89 = vld [vmem:[%s0 + $0x1f0] sm:$0xff]
    %v90 = vld [vmem:[%s0 + $0x1f8] sm:$0xff]
    %v91 = vld [vmem:[%s1] sm:$0x7]
    %v92 = vld [vmem:[%s2] sm:$0x1]
    %v94 = vlaneseq
    %v95 = vshrl.u32 %v94, 7
    %v96 = vsub.s32 0, %v95
    %v97 = vrot.slane %v92, %v96
    %vm99 = vcmask 23552
    %v101 = vsel %vm99, %v27, 0
    %v104 = vsel %vm99, %v28, 0
    %v107 = vsel %vm99, %v29, 0
    %v110 = vsel %vm99, %v30, 0
    %v113 = vsel %vm99, %v31, 0
    %v116 = vsel %vm99, %v32, 0
    %v119 = vsel %vm99, %v33, 0
    %v122 = vsel %vm99, %v34, 0
    %v125 = vsel %vm99, %v35, 0
    %v128 = vsel %vm99, %v36, 0
    %v131 = vsel %vm99, %v37, 0
    %v134 = vsel %vm99, %v38, 0
    %v137 = vsel %vm99, %v39, 0
    %v140 = vsel %vm99, %v40, 0
    %v143 = vsel %vm99, %v41, 0
    %v146 = vsel %vm99, %v42, 0
    %v149 = vsel %vm99, %v43, 0
    %v152 = vsel %vm99, %v44, 0
    %v155 = vsel %vm99, %v45, 0
    %v158 = vsel %vm99, %v46, 0
    %v161 = vsel %vm99, %v47, 0
    %v164 = vsel %vm99, %v48, 0
    %v167 = vsel %vm99, %v49, 0
    %v170 = vsel %vm99, %v50, 0
    %v173 = vsel %vm99, %v51, 0
    %v176 = vsel %vm99, %v52, 0
    %v179 = vsel %vm99, %v53, 0
    %v182 = vsel %vm99, %v54, 0
    %v185 = vsel %vm99, %v55, 0
    %v188 = vsel %vm99, %v56, 0
    %v191 = vsel %vm99, %v57, 0
    %v194 = vsel %vm99, %v58, 0
    %v197 = vsel %vm99, %v59, 0
    %v200 = vsel %vm99, %v60, 0
    %v203 = vsel %vm99, %v61, 0
    %v206 = vsel %vm99, %v62, 0
    %v209 = vsel %vm99, %v63, 0
    %v212 = vsel %vm99, %v64, 0
    %v215 = vsel %vm99, %v65, 0
    %v218 = vsel %vm99, %v66, 0
    %v221 = vsel %vm99, %v67, 0
    %v224 = vsel %vm99, %v68, 0
    %v227 = vsel %vm99, %v69, 0
    %v230 = vsel %vm99, %v70, 0
    %v233 = vsel %vm99, %v71, 0
    %v236 = vsel %vm99, %v72, 0
    %v239 = vsel %vm99, %v73, 0
    %v242 = vsel %vm99, %v74, 0
    %v245 = vsel %vm99, %v75, 0
    %v248 = vsel %vm99, %v76, 0
    %v251 = vsel %vm99, %v77, 0
    %v254 = vsel %vm99, %v78, 0
    %v257 = vsel %vm99, %v79, 0
    %v260 = vsel %vm99, %v80, 0
    %v263 = vsel %vm99, %v81, 0
    %v266 = vsel %vm99, %v82, 0
    %v269 = vsel %vm99, %v83, 0
    %v272 = vsel %vm99, %v84, 0
    %v275 = vsel %vm99, %v85, 0
    %v278 = vsel %vm99, %v86, 0
    %v281 = vsel %vm99, %v87, 0
    %v284 = vsel %vm99, %v88, 0
    %v287 = vsel %vm99, %v89, 0
    %v290 = vsel %vm99, %v90, 0
    %vm292 = vcmask 1042432
    %v294 = vsel %vm292, %v91, 0
    %296 = vmatprep.subr.mxu0 0.0
    %297 = vmatpush1.msra.mxu0 %v294
    %298 = vmatprep.subr.mxu0 0.0
    %299 = vmatpush1.msra.mxu0 0.0
    %300 = vmatprep.subr.mxu0 0.0
    %301 = vmatpush1.msra.mxu0 0.0
    %302 = vmatprep.subr.mxu0 0.0
    %303 = vmatpush1.msra.mxu0 0.0
    %304 = vmatprep.subr.mxu0 0.0
    %305 = vmatpush1.msra.mxu0 0.0
    %306 = vmatprep.subr.mxu0 0.0
    %307 = vmatpush1.msra.mxu0 0.0
    %308 = vmatprep.subr.mxu0 0.0
    %309 = vmatpush1.msra.mxu0 0.0
    %310 = vmatprep.subr.mxu0 0.0
    %311 = vmatpush1.msra.mxu0 0.0
    %312 = vmatprep.subr.mxu0 0.0
    %313 = vmatpush1.msra.mxu0 0.0
    %314 = vmatprep.subr.mxu0 0.0
    %315 = vmatpush1.msra.mxu0 0.0
    %316 = vmatprep.subr.mxu0 0.0
    %317 = vmatpush1.msra.mxu0 0.0
    %318 = vmatprep.subr.mxu0 0.0
    %319 = vmatpush1.msra.mxu0 0.0
    %320 = vmatprep.subr.mxu0 0.0
    %321 = vmatpush1.msra.mxu0 0.0
    %322 = vmatprep.subr.mxu0 0.0
    %323 = vmatpush1.msra.mxu0 0.0
    %324 = vmatprep.subr.mxu0 0.0
    %325 = vmatpush1.msra.mxu0 0.0
    %326 = vmatprep.subr.mxu0 0.0
    %327 = vmatpush1.msra.mxu0 0.0
    %328 = vmatprep.subr.mxu0 0.0
    %329 = vmatpush1.msra.mxu0 0.0
    %330 = vmatprep.subr.mxu0 0.0
    %331 = vmatpush1.msra.mxu0 0.0
    %332 = vmatprep.subr.mxu0 0.0
    %333 = vmatpush1.msra.mxu0 0.0
    %334 = vmatprep.subr.mxu0 0.0
    %335 = vmatpush1.msra.mxu0 0.0
    %336 = vmatprep.subr.mxu0 0.0
    %337 = vmatpush1.msra.mxu0 0.0
    %338 = vmatprep.subr.mxu0 0.0
    %339 = vmatpush1.msra.mxu0 0.0
    %340 = vmatprep.subr.mxu0 0.0
    %341 = vmatpush1.msra.mxu0 0.0
    %342 = vmatprep.subr.mxu0 0.0
    %343 = vmatpush1.msra.mxu0 0.0
    %344 = vmatprep.subr.mxu0 0.0
    %345 = vmatpush1.msra.mxu0 0.0
    %346 = vmatprep.subr.mxu0 0.0
    %347 = vmatpush1.msra.mxu0 0.0
    %348 = vmatprep.subr.mxu0 0.0
    %349 = vmatpush1.msra.mxu0 0.0
    %350 = vmatprep.subr.mxu0 0.0
    %351 = vmatpush1.msra.mxu0 0.0
    %352 = vmatprep.subr.mxu0 0.0
    %353 = vmatpush1.msra.mxu0 0.0
    %354 = vmatprep.subr.mxu0 0.0
    %355 = vmatpush1.msra.mxu0 0.0
    %356 = vmatprep.subr.mxu0 0.0
    %357 = vmatpush1.msra.mxu0 0.0
    %358 = vmatprep.subr.mxu0 0.0
    %359 = vmatpush1.msra.mxu0 0.0
    %360 = vmatprep.mubr.f32.mxu0 0.0
    %361 = vmatmul.mubr.f32.gmra.mrb[0].mxu0 %v101
    %v362 = vpop.f32.mrb[0].mxu0
    %v363 = vadd.f32 %v97, %v362
    %v364 = vpop.f32.mrb[0].mxu0
    %365 = vmatprep.mubr.f32.mxu0 0.0
    %366 = vmatmul.mubr.f32.gmra.mrb[0].mxu0 %v104
    %v367 = vpop.f32.mrb[0].mxu0
    %v368 = vadd.f32 %v97, %v367
    %v369 = vpop.f32.mrb[0].mxu0
    %370 = vmatprep.mubr.f32.mxu0 0.0
    %371 = vmatmul.mubr.f32.gmra.mrb[0].mxu0 %v107
    %v372 = vpop.f32.mrb[0].mxu0
    %v373 = vadd.f32 %v97, %v372
    %v374 = vpop.f32.mrb[0].mxu0
    %375 = vmatprep.mubr.f32.mxu0 0.0
    %376 = vmatmul.mubr.f32.gmra.mrb[0].mxu0 %v110
    %v377 = vpop.f32.mrb[0].mxu0
    %v378 = vadd.f32 %v97, %v377
    %v379 = vpop.f32.mrb[0].mxu0
    %380 = vmatprep.mubr.f32.mxu0 0.0
    %381 = vmatmul.mubr.f32.gmra.mrb[0].mxu0 %v113
    %v382 = vpop.f32.mrb[0].mxu0
    %v383 = vadd.f32 %v97, %v382
    %v384 = vpop.f32.mrb[0].mxu0
    %385 = vmatprep.mubr.f32.mxu0 0.0
    %386 = vmatmul.mubr.f32.gmra.mrb[0].mxu0 %v116
    %v387 = vpop.f32.mrb[0].mxu0
    %v388 = vadd.f32 %v97, %v387
    %v389 = vpop.f32.mrb[0].mxu0
    %390 = vmatprep.mubr.f32.mxu0 0.0
    %391 = vmatmul.mubr.f32.gmra.mrb[0].mxu0 %v119
    %v392 = vpop.f32.mrb[0].mxu0
    %v393 = vadd.f32 %v97, %v392
    %v394 = vpop.f32.mrb[0].mxu0
    %395 = vmatprep.mubr.f32.mxu0 0.0
    %396 = vmatmul.mubr.f32.gmra.mrb[0].mxu0 %v122
    %v397 = vpop.f32.mrb[0].mxu0
    %v398 = vadd.f32 %v97, %v397
    %v399 = vpop.f32.mrb[0].mxu0
    %400 = vmatprep.mubr.f32.mxu0 0.0
    %401 = vmatmul.mubr.f32.gmra.mrb[0].mxu0 %v125
    %v402 = vpop.f32.mrb[0].mxu0
    %v403 = vadd.f32 %v97, %v402
    %v404 = vpop.f32.mrb[0].mxu0
    %405 = vmatprep.mubr.f32.mxu0 0.0
    %406 = vmatmul.mubr.f32.gmra.mrb[0].mxu0 %v128
    %v407 = vpop.f32.mrb[0].mxu0
    %v408 = vadd.f32 %v97, %v407
    %v409 = vpop.f32.mrb[0].mxu0
    %410 = vmatprep.mubr.f32.mxu0 0.0
    %411 = vmatmul.mubr.f32.gmra.mrb[0].mxu0 %v131
    %v412 = vpop.f32.mrb[0].mxu0
    %v413 = vadd.f32 %v97, %v412
    %v414 = vpop.f32.mrb[0].mxu0
    %415 = vmatprep.mubr.f32.mxu0 0.0
    %416 = vmatmul.mubr.f32.gmra.mrb[0].mxu0 %v134
    %v417 = vpop.f32.mrb[0].mxu0
    %v418 = vadd.f32 %v97, %v417
    %v419 = vpop.f32.mrb[0].mxu0
    %420 = vmatprep.mubr.f32.mxu0 0.0
    %421 = vmatmul.mubr.f32.gmra.mrb[0].mxu0 %v137
    %v422 = vpop.f32.mrb[0].mxu0
    %v423 = vadd.f32 %v97, %v422
    %v424 = vpop.f32.mrb[0].mxu0
    %425 = vmatprep.mubr.f32.mxu0 0.0
    %426 = vmatmul.mubr.f32.gmra.mrb[0].mxu0 %v140
    %v427 = vpop.f32.mrb[0].mxu0
    %v428 = vadd.f32 %v97, %v427
    %v429 = vpop.f32.mrb[0].mxu0
    %430 = vmatprep.mubr.f32.mxu0 0.0
    %431 = vmatmul.mubr.f32.gmra.mrb[0].mxu0 %v143
    %v432 = vpop.f32.mrb[0].mxu0
    %v433 = vadd.f32 %v97, %v432
    %v434 = vpop.f32.mrb[0].mxu0
    %435 = vmatprep.mubr.f32.mxu0 0.0
    %436 = vmatmul.mubr.f32.gmra.mrb[0].mxu0 %v146
    %v437 = vpop.f32.mrb[0].mxu0
    %v438 = vadd.f32 %v97, %v437
    %v439 = vpop.f32.mrb[0].mxu0
    %440 = vmatprep.mubr.f32.mxu0 0.0
    %441 = vmatmul.mubr.f32.gmra.mrb[0].mxu0 %v149
    %v442 = vpop.f32.mrb[0].mxu0
    %v443 = vadd.f32 %v97, %v442
    %v444 = vpop.f32.mrb[0].mxu0
    %445 = vmatprep.mubr.f32.mxu0 0.0
    %446 = vmatmul.mubr.f32.gmra.mrb[0].mxu0 %v152
    %v447 = vpop.f32.mrb[0].mxu0
    %v448 = vadd.f32 %v97, %v447
    %v449 = vpop.f32.mrb[0].mxu0
    %450 = vmatprep.mubr.f32.mxu0 0.0
    %451 = vmatmul.mubr.f32.gmra.mrb[0].mxu0 %v155
    %v452 = vpop.f32.mrb[0].mxu0
    %v453 = vadd.f32 %v97, %v452
    %v454 = vpop.f32.mrb[0].mxu0
    %455 = vmatprep.mubr.f32.mxu0 0.0
    %456 = vmatmul.mubr.f32.gmra.mrb[0].mxu0 %v158
    %v457 = vpop.f32.mrb[0].mxu0
    %v458 = vadd.f32 %v97, %v457
    %v459 = vpop.f32.mrb[0].mxu0
    %460 = vmatprep.mubr.f32.mxu0 0.0
    %461 = vmatmul.mubr.f32.gmra.mrb[0].mxu0 %v161
    %v462 = vpop.f32.mrb[0].mxu0
    %v463 = vadd.f32 %v97, %v462
    %v464 = vpop.f32.mrb[0].mxu0
    %465 = vmatprep.mubr.f32.mxu0 0.0
    %466 = vmatmul.mubr.f32.gmra.mrb[0].mxu0 %v164
    %v467 = vpop.f32.mrb[0].mxu0
    %v468 = vadd.f32 %v97, %v467
    %v469 = vpop.f32.mrb[0].mxu0
    %470 = vmatprep.mubr.f32.mxu0 0.0
    %471 = vmatmul.mubr.f32.gmra.mrb[0].mxu0 %v167
    %v472 = vpop.f32.mrb[0].mxu0
    %v473 = vadd.f32 %v97, %v472
    %v474 = vpop.f32.mrb[0].mxu0
    %475 = vmatprep.mubr.f32.mxu0 0.0
    %476 = vmatmul.mubr.f32.gmra.mrb[0].mxu0 %v170
    %v477 = vpop.f32.mrb[0].mxu0
    %v478 = vadd.f32 %v97, %v477
    %v479 = vpop.f32.mrb[0].mxu0
    %480 = vmatprep.mubr.f32.mxu0 0.0
    %481 = vmatmul.mubr.f32.gmra.mrb[0].mxu0 %v173
    %v482 = vpop.f32.mrb[0].mxu0
    %v483 = vadd.f32 %v97, %v482
    %v484 = vpop.f32.mrb[0].mxu0
    %485 = vmatprep.mubr.f32.mxu0 0.0
    %486 = vmatmul.mubr.f32.gmra.mrb[0].mxu0 %v176
    %v487 = vpop.f32.mrb[0].mxu0
    %v488 = vadd.f32 %v97, %v487
    %v489 = vpop.f32.mrb[0].mxu0
    %490 = vmatprep.mubr.f32.mxu0 0.0
    %491 = vmatmul.mubr.f32.gmra.mrb[0].mxu0 %v179
    %v492 = vpop.f32.mrb[0].mxu0
    %v493 = vadd.f32 %v97, %v492
    %v494 = vpop.f32.mrb[0].mxu0
    %495 = vmatprep.mubr.f32.mxu0 0.0
    %496 = vmatmul.mubr.f32.gmra.mrb[0].mxu0 %v182
    %v497 = vpop.f32.mrb[0].mxu0
    %v498 = vadd.f32 %v97, %v497
    %v499 = vpop.f32.mrb[0].mxu0
    %500 = vmatprep.mubr.f32.mxu0 0.0
    %501 = vmatmul.mubr.f32.gmra.mrb[0].mxu0 %v185
    %v502 = vpop.f32.mrb[0].mxu0
    %v503 = vadd.f32 %v97, %v502
    %v504 = vpop.f32.mrb[0].mxu0
    %505 = vmatprep.mubr.f32.mxu0 0.0
    %506 = vmatmul.mubr.f32.gmra.mrb[0].mxu0 %v188
    %v507 = vpop.f32.mrb[0].mxu0
    %v508 = vadd.f32 %v97, %v507
    %v509 = vpop.f32.mrb[0].mxu0
    %510 = vmatprep.mubr.f32.mxu0 0.0
    %511 = vmatmul.mubr.f32.gmra.mrb[0].mxu0 %v191
    %v512 = vpop.f32.mrb[0].mxu0
    %v513 = vadd.f32 %v97, %v512
    %v514 = vpop.f32.mrb[0].mxu0
    %515 = vmatprep.mubr.f32.mxu0 0.0
    %516 = vmatmul.mubr.f32.gmra.mrb[0].mxu0 %v194
    %v517 = vpop.f32.mrb[0].mxu0
    %v518 = vadd.f32 %v97, %v517
    %v519 = vpop.f32.mrb[0].mxu0
    %520 = vmatprep.mubr.f32.mxu0 0.0
    %521 = vmatmul.mubr.f32.gmra.mrb[0].mxu0 %v197
    %v522 = vpop.f32.mrb[0].mxu0
    %v523 = vadd.f32 %v97, %v522
    %v524 = vpop.f32.mrb[0].mxu0
    %525 = vmatprep.mubr.f32.mxu0 0.0
    %526 = vmatmul.mubr.f32.gmra.mrb[0].mxu0 %v200
    %v527 = vpop.f32.mrb[0].mxu0
    %v528 = vadd.f32 %v97, %v527
    %v529 = vpop.f32.mrb[0].mxu0
    %530 = vmatprep.mubr.f32.mxu0 0.0
    %531 = vmatmul.mubr.f32.gmra.mrb[0].mxu0 %v203
    %v532 = vpop.f32.mrb[0].mxu0
    %v533 = vadd.f32 %v97, %v532
    %v534 = vpop.f32.mrb[0].mxu0
    %535 = vmatprep.mubr.f32.mxu0 0.0
    %536 = vmatmul.mubr.f32.gmra.mrb[0].mxu0 %v206
    %v537 = vpop.f32.mrb[0].mxu0
    %v538 = vadd.f32 %v97, %v537
    %v539 = vpop.f32.mrb[0].mxu0
    %540 = vmatprep.mubr.f32.mxu0 0.0
    %541 = vmatmul.mubr.f32.gmra.mrb[0].mxu0 %v209
    %v542 = vpop.f32.mrb[0].mxu0
    %v543 = vadd.f32 %v97, %v542
    %v544 = vpop.f32.mrb[0].mxu0
    %545 = vmatprep.mubr.f32.mxu0 0.0
    %546 = vmatmul.mubr.f32.gmra.mrb[0].mxu0 %v212
    %v547 = vpop.f32.mrb[0].mxu0
    %v548 = vadd.f32 %v97, %v547
    %v549 = vpop.f32.mrb[0].mxu0
    %550 = vmatprep.mubr.f32.mxu0 0.0
    %551 = vmatmul.mubr.f32.gmra.mrb[0].mxu0 %v215
    %v552 = vpop.f32.mrb[0].mxu0
    %v553 = vadd.f32 %v97, %v552
    %v554 = vpop.f32.mrb[0].mxu0
    %555 = vmatprep.mubr.f32.mxu0 0.0
    %556 = vmatmul.mubr.f32.gmra.mrb[0].mxu0 %v218
    %v557 = vpop.f32.mrb[0].mxu0
    %v558 = vadd.f32 %v97, %v557
    %v559 = vpop.f32.mrb[0].mxu0
    %560 = vmatprep.mubr.f32.mxu0 0.0
    %561 = vmatmul.mubr.f32.gmra.mrb[0].mxu0 %v221
    %v562 = vpop.f32.mrb[0].mxu0
    %v563 = vadd.f32 %v97, %v562
    %v564 = vpop.f32.mrb[0].mxu0
    %565 = vmatprep.mubr.f32.mxu0 0.0
    %566 = vmatmul.mubr.f32.gmra.mrb[0].mxu0 %v224
    %v567 = vpop.f32.mrb[0].mxu0
    %v568 = vadd.f32 %v97, %v567
    %v569 = vpop.f32.mrb[0].mxu0
    %570 = vmatprep.mubr.f32.mxu0 0.0
    %571 = vmatmul.mubr.f32.gmra.mrb[0].mxu0 %v227
    %v572 = vpop.f32.mrb[0].mxu0
    %v573 = vadd.f32 %v97, %v572
    %v574 = vpop.f32.mrb[0].mxu0
    %575 = vmatprep.mubr.f32.mxu0 0.0
    %576 = vmatmul.mubr.f32.gmra.mrb[0].mxu0 %v230
    %v577 = vpop.f32.mrb[0].mxu0
    %v578 = vadd.f32 %v97, %v577
    %v579 = vpop.f32.mrb[0].mxu0
    %580 = vmatprep.mubr.f32.mxu0 0.0
    %581 = vmatmul.mubr.f32.gmra.mrb[0].mxu0 %v233
    %v582 = vpop.f32.mrb[0].mxu0
    %v583 = vadd.f32 %v97, %v582
    %v584 = vpop.f32.mrb[0].mxu0
    %585 = vmatprep.mubr.f32.mxu0 0.0
    %586 = vmatmul.mubr.f32.gmra.mrb[0].mxu0 %v236
    %v587 = vpop.f32.mrb[0].mxu0
    %v588 = vadd.f32 %v97, %v587
    %v589 = vpop.f32.mrb[0].mxu0
    %590 = vmatprep.mubr.f32.mxu0 0.0
    %591 = vmatmul.mubr.f32.gmra.mrb[0].mxu0 %v239
    %v592 = vpop.f32.mrb[0].mxu0
    %v593 = vadd.f32 %v97, %v592
    %v594 = vpop.f32.mrb[0].mxu0
    %595 = vmatprep.mubr.f32.mxu0 0.0
    %596 = vmatmul.mubr.f32.gmra.mrb[0].mxu0 %v242
    %v597 = vpop.f32.mrb[0].mxu0
    %v598 = vadd.f32 %v97, %v597
    %v599 = vpop.f32.mrb[0].mxu0
    %600 = vmatprep.mubr.f32.mxu0 0.0
    %601 = vmatmul.mubr.f32.gmra.mrb[0].mxu0 %v245
    %v602 = vpop.f32.mrb[0].mxu0
    %v603 = vadd.f32 %v97, %v602
    %v604 = vpop.f32.mrb[0].mxu0
    %605 = vmatprep.mubr.f32.mxu0 0.0
    %606 = vmatmul.mubr.f32.gmra.mrb[0].mxu0 %v248
    %v607 = vpop.f32.mrb[0].mxu0
    %v608 = vadd.f32 %v97, %v607
    %v609 = vpop.f32.mrb[0].mxu0
    %610 = vmatprep.mubr.f32.mxu0 0.0
    %611 = vmatmul.mubr.f32.gmra.mrb[0].mxu0 %v251
    %v612 = vpop.f32.mrb[0].mxu0
    %v613 = vadd.f32 %v97, %v612
    %v614 = vpop.f32.mrb[0].mxu0
    %615 = vmatprep.mubr.f32.mxu0 0.0
    %616 = vmatmul.mubr.f32.gmra.mrb[0].mxu0 %v254
    %v617 = vpop.f32.mrb[0].mxu0
    %v618 = vadd.f32 %v97, %v617
    %v619 = vpop.f32.mrb[0].mxu0
    %620 = vmatprep.mubr.f32.mxu0 0.0
    %621 = vmatmul.mubr.f32.gmra.mrb[0].mxu0 %v257
    %v622 = vpop.f32.mrb[0].mxu0
    %v623 = vadd.f32 %v97, %v622
    %v624 = vpop.f32.mrb[0].mxu0
    %625 = vmatprep.mubr.f32.mxu0 0.0
    %626 = vmatmul.mubr.f32.gmra.mrb[0].mxu0 %v260
    %v627 = vpop.f32.mrb[0].mxu0
    %v628 = vadd.f32 %v97, %v627
    %v629 = vpop.f32.mrb[0].mxu0
    %630 = vmatprep.mubr.f32.mxu0 0.0
    %631 = vmatmul.mubr.f32.gmra.mrb[0].mxu0 %v263
    %v632 = vpop.f32.mrb[0].mxu0
    %v633 = vadd.f32 %v97, %v632
    %v634 = vpop.f32.mrb[0].mxu0
    %635 = vmatprep.mubr.f32.mxu0 0.0
    %636 = vmatmul.mubr.f32.gmra.mrb[0].mxu0 %v266
    %v637 = vpop.f32.mrb[0].mxu0
    %v638 = vadd.f32 %v97, %v637
    %v639 = vpop.f32.mrb[0].mxu0
    %640 = vmatprep.mubr.f32.mxu0 0.0
    %641 = vmatmul.mubr.f32.gmra.mrb[0].mxu0 %v269
    %v642 = vpop.f32.mrb[0].mxu0
    %v643 = vadd.f32 %v97, %v642
    %v644 = vpop.f32.mrb[0].mxu0
    %645 = vmatprep.mubr.f32.mxu0 0.0
    %646 = vmatmul.mubr.f32.gmra.mrb[0].mxu0 %v272
    %v647 = vpop.f32.mrb[0].mxu0
    %v648 = vadd.f32 %v97, %v647
    %v649 = vpop.f32.mrb[0].mxu0
    %650 = vmatprep.mubr.f32.mxu0 0.0
    %651 = vmatmul.mubr.f32.gmra.mrb[0].mxu0 %v275
    %v652 = vpop.f32.mrb[0].mxu0
    %v653 = vadd.f32 %v97, %v652
    %v654 = vpop.f32.mrb[0].mxu0
    %655 = vmatprep.mubr.f32.mxu0 0.0
    %656 = vmatmul.mubr.f32.gmra.mrb[0].mxu0 %v278
    %v657 = vpop.f32.mrb[0].mxu0
    %v658 = vadd.f32 %v97, %v657
    %v659 = vpop.f32.mrb[0].mxu0
    %660 = vmatprep.mubr.f32.mxu0 0.0
    %661 = vmatmul.mubr.f32.gmra.mrb[0].mxu0 %v281
    %v662 = vpop.f32.mrb[0].mxu0
    %v663 = vadd.f32 %v97, %v662
    %v664 = vpop.f32.mrb[0].mxu0
    %665 = vmatprep.mubr.f32.mxu0 0.0
    %666 = vmatmul.mubr.f32.gmra.mrb[0].mxu0 %v284
    %v667 = vpop.f32.mrb[0].mxu0
    %v668 = vadd.f32 %v97, %v667
    %v669 = vpop.f32.mrb[0].mxu0
    %670 = vmatprep.mubr.f32.mxu0 0.0
    %671 = vmatmul.mubr.f32.gmra.mrb[0].mxu0 %v287
    %v672 = vpop.f32.mrb[0].mxu0
    %v673 = vadd.f32 %v97, %v672
    %v674 = vpop.f32.mrb[0].mxu0
    %675 = vmatprep.mubr.f32.mxu0 0.0
    %676 = vmatmul.mubr.f32.gmra.mrb[0].mxu0 %v290
    %v677 = vpop.f32.mrb[0].mxu0
    %v678 = vadd.f32 %v97, %v677
    %v679 = vpop.f32.mrb[0].mxu0
    %680 = vdwg.mxu0
    %v681 = vld [vmem:[%s3] sm:$0xff]
    %v682 = vld [vmem:[%s3 + $0x8] sm:$0xff]
    %v683 = vld [vmem:[%s3 + $0x10] sm:$0xff]
    %v684 = vld [vmem:[%s3 + $0x18] sm:$0xff]
    %v685 = vld [vmem:[%s3 + $0x20] sm:$0xff]
    %v686 = vld [vmem:[%s3 + $0x28] sm:$0xff]
    %v687 = vld [vmem:[%s3 + $0x30] sm:$0xff]
    %v688 = vld [vmem:[%s3 + $0x38] sm:$0xff]
    %v689 = vld [vmem:[%s3 + $0x40] sm:$0xff]
    %v690 = vld [vmem:[%s3 + $0x48] sm:$0xff]
    %v691 = vld [vmem:[%s3 + $0x50] sm:$0xff]
    %v692 = vld [vmem:[%s3 + $0x58] sm:$0xff]
    %v693 = vld [vmem:[%s3 + $0x60] sm:$0xff]
    %v694 = vld [vmem:[%s3 + $0x68] sm:$0xff]
    %v695 = vld [vmem:[%s3 + $0x70] sm:$0xff]
    %v696 = vld [vmem:[%s3 + $0x78] sm:$0xff]
    %v697 = vld [vmem:[%s4] sm:$0x1]
    %v699 = vlaneseq
    %v700 = vshrl.u32 %v699, 7
    %v701 = vsub.s32 0, %v700
    %v702 = vrot.slane %v697, %v701
    %704 = vmatprep.subr.mxu0 0.0
    %705 = vmatpush1.msra.mxu0 %v681
    %706 = vmatprep.subr.mxu0 0.0
    %707 = vmatpush1.msra.mxu0 %v682
    %708 = vmatprep.subr.mxu0 0.0
    %709 = vmatpush1.msra.mxu0 %v683
    %710 = vmatprep.subr.mxu0 0.0
    %711 = vmatpush1.msra.mxu0 %v684
    %712 = vmatprep.subr.mxu0 0.0
    %713 = vmatpush1.msra.mxu0 %v685
    %714 = vmatprep.subr.mxu0 0.0
    %715 = vmatpush1.msra.mxu0 %v686
    %716 = vmatprep.subr.mxu0 0.0
    %717 = vmatpush1.msra.mxu0 %v687
    %718 = vmatprep.subr.mxu0 0.0
    %719 = vmatpush1.msra.mxu0 %v688
    %720 = vmatprep.subr.mxu0 0.0
    %721 = vmatpush1.msra.mxu0 %v689
    %722 = vmatprep.subr.mxu0 0.0
    %723 = vmatpush1.msra.mxu0 %v690
    %724 = vmatprep.subr.mxu0 0.0
    %725 = vmatpush1.msra.mxu0 %v691
    %726 = vmatprep.subr.mxu0 0.0
    %727 = vmatpush1.msra.mxu0 %v692
    %728 = vmatprep.subr.mxu0 0.0
    %729 = vmatpush1.msra.mxu0 %v693
    %730 = vmatprep.subr.mxu0 0.0
    %731 = vmatpush1.msra.mxu0 %v694
    %732 = vmatprep.subr.mxu0 0.0
    %733 = vmatpush1.msra.mxu0 %v695
    %734 = vmatprep.subr.mxu0 0.0
    %735 = vmatpush1.msra.mxu0 %v696
    %736 = vmatprep.subr.mxu0 0.0
    %737 = vmatpush1.msra.mxu0 0.0
    %738 = vmatprep.subr.mxu0 0.0
    %739 = vmatpush1.msra.mxu0 0.0
    %740 = vmatprep.subr.mxu0 0.0
    %741 = vmatpush1.msra.mxu0 0.0
    %742 = vmatprep.subr.mxu0 0.0
    %743 = vmatpush1.msra.mxu0 0.0
    %744 = vmatprep.subr.mxu0 0.0
    %745 = vmatpush1.msra.mxu0 0.0
    %746 = vmatprep.subr.mxu0 0.0
    %747 = vmatpush1.msra.mxu0 0.0
    %748 = vmatprep.subr.mxu0 0.0
    %749 = vmatpush1.msra.mxu0 0.0
    %750 = vmatprep.subr.mxu0 0.0
    %751 = vmatpush1.msra.mxu0 0.0
    %752 = vmatprep.subr.mxu0 0.0
    %753 = vmatpush1.msra.mxu0 0.0
    %754 = vmatprep.subr.mxu0 0.0
    %755 = vmatpush1.msra.mxu0 0.0
    %756 = vmatprep.subr.mxu0 0.0
    %757 = vmatpush1.msra.mxu0 0.0
    %758 = vmatprep.subr.mxu0 0.0
    %759 = vmatpush1.msra.mxu0 0.0
    %760 = vmatprep.subr.mxu0 0.0
    %761 = vmatpush1.msra.mxu0 0.0
    %762 = vmatprep.subr.mxu0 0.0
    %763 = vmatpush1.msra.mxu0 0.0
    %764 = vmatprep.subr.mxu0 0.0
    %765 = vmatpush1.msra.mxu0 0.0
    %766 = vmatprep.subr.mxu0 0.0
    %767 = vmatpush1.msra.mxu0 0.0
    %768 = vmatprep.mubr.f32.mxu0 0.0
    %769 = vmatmul.mubr.f32.gmra.mrb[0].mxu0 %v363
    %v770 = vpop.f32.mrb[0].mxu0
    %v771 = vadd.f32 %v702, %v770
    %v772 = vpop.f32.mrb[0].mxu0
    %773 = vmatprep.mubr.f32.mxu0 0.0
    %774 = vmatmul.mubr.f32.gmra.mrb[0].mxu0 %v368
    %v775 = vpop.f32.mrb[0].mxu0
    %v776 = vadd.f32 %v702, %v775
    %v777 = vpop.f32.mrb[0].mxu0
    %778 = vmatprep.mubr.f32.mxu0 0.0
    %779 = vmatmul.mubr.f32.gmra.mrb[0].mxu0 %v373
    %v780 = vpop.f32.mrb[0].mxu0
    %v781 = vadd.f32 %v702, %v780
    %v782 = vpop.f32.mrb[0].mxu0
    %783 = vmatprep.mubr.f32.mxu0 0.0
    %784 = vmatmul.mubr.f32.gmra.mrb[0].mxu0 %v378
    %v785 = vpop.f32.mrb[0].mxu0
    %v786 = vadd.f32 %v702, %v785
    %v787 = vpop.f32.mrb[0].mxu0
    %788 = vmatprep.mubr.f32.mxu0 0.0
    %789 = vmatmul.mubr.f32.gmra.mrb[0].mxu0 %v383
    %v790 = vpop.f32.mrb[0].mxu0
    %v791 = vadd.f32 %v702, %v790
    %v792 = vpop.f32.mrb[0].mxu0
    %793 = vmatprep.mubr.f32.mxu0 0.0
    %794 = vmatmul.mubr.f32.gmra.mrb[0].mxu0 %v388
    %v795 = vpop.f32.mrb[0].mxu0
    %v796 = vadd.f32 %v702, %v795
    %v797 = vpop.f32.mrb[0].mxu0
    %798 = vmatprep.mubr.f32.mxu0 0.0
    %799 = vmatmul.mubr.f32.gmra.mrb[0].mxu0 %v393
    %v800 = vpop.f32.mrb[0].mxu0
    %v801 = vadd.f32 %v702, %v800
    %v802 = vpop.f32.mrb[0].mxu0
    %803 = vmatprep.mubr.f32.mxu0 0.0
    %804 = vmatmul.mubr.f32.gmra.mrb[0].mxu0 %v398
    %v805 = vpop.f32.mrb[0].mxu0
    %v806 = vadd.f32 %v702, %v805
    %v807 = vpop.f32.mrb[0].mxu0
    %808 = vmatprep.mubr.f32.mxu0 0.0
    %809 = vmatmul.mubr.f32.gmra.mrb[0].mxu0 %v403
    %v810 = vpop.f32.mrb[0].mxu0
    %v811 = vadd.f32 %v702, %v810
    %v812 = vpop.f32.mrb[0].mxu0
    %813 = vmatprep.mubr.f32.mxu0 0.0
    %814 = vmatmul.mubr.f32.gmra.mrb[0].mxu0 %v408
    %v815 = vpop.f32.mrb[0].mxu0
    %v816 = vadd.f32 %v702, %v815
    %v817 = vpop.f32.mrb[0].mxu0
    %818 = vmatprep.mubr.f32.mxu0 0.0
    %819 = vmatmul.mubr.f32.gmra.mrb[0].mxu0 %v413
    %v820 = vpop.f32.mrb[0].mxu0
    %v821 = vadd.f32 %v702, %v820
    %v822 = vpop.f32.mrb[0].mxu0
    %823 = vmatprep.mubr.f32.mxu0 0.0
    %824 = vmatmul.mubr.f32.gmra.mrb[0].mxu0 %v418
    %v825 = vpop.f32.mrb[0].mxu0
    %v826 = vadd.f32 %v702, %v825
    %v827 = vpop.f32.mrb[0].mxu0
    %828 = vmatprep.mubr.f32.mxu0 0.0
    %829 = vmatmul.mubr.f32.gmra.mrb[0].mxu0 %v423
    %v830 = vpop.f32.mrb[0].mxu0
    %v831 = vadd.f32 %v702, %v830
    %v832 = vpop.f32.mrb[0].mxu0
    %833 = vmatprep.mubr.f32.mxu0 0.0
    %834 = vmatmul.mubr.f32.gmra.mrb[0].mxu0 %v428
    %v835 = vpop.f32.mrb[0].mxu0
    %v836 = vadd.f32 %v702, %v835
    %v837 = vpop.f32.mrb[0].mxu0
    %838 = vmatprep.mubr.f32.mxu0 0.0
    %839 = vmatmul.mubr.f32.gmra.mrb[0].mxu0 %v433
    %v840 = vpop.f32.mrb[0].mxu0
    %v841 = vadd.f32 %v702, %v840
    %v842 = vpop.f32.mrb[0].mxu0
    %843 = vmatprep.mubr.f32.mxu0 0.0
    %844 = vmatmul.mubr.f32.gmra.mrb[0].mxu0 %v438
    %v845 = vpop.f32.mrb[0].mxu0
    %v846 = vadd.f32 %v702, %v845
    %v847 = vpop.f32.mrb[0].mxu0
    %848 = vmatprep.mubr.f32.mxu0 0.0
    %849 = vmatmul.mubr.f32.gmra.mrb[0].mxu0 %v443
    %v850 = vpop.f32.mrb[0].mxu0
    %v851 = vadd.f32 %v702, %v850
    %v852 = vpop.f32.mrb[0].mxu0
    %853 = vmatprep.mubr.f32.mxu0 0.0
    %854 = vmatmul.mubr.f32.gmra.mrb[0].mxu0 %v448
    %v855 = vpop.f32.mrb[0].mxu0
    %v856 = vadd.f32 %v702, %v855
    %v857 = vpop.f32.mrb[0].mxu0
    %858 = vmatprep.mubr.f32.mxu0 0.0
    %859 = vmatmul.mubr.f32.gmra.mrb[0].mxu0 %v453
    %v860 = vpop.f32.mrb[0].mxu0
    %v861 = vadd.f32 %v702, %v860
    %v862 = vpop.f32.mrb[0].mxu0
    %863 = vmatprep.mubr.f32.mxu0 0.0
    %864 = vmatmul.mubr.f32.gmra.mrb[0].mxu0 %v458
    %v865 = vpop.f32.mrb[0].mxu0
    %v866 = vadd.f32 %v702, %v865
    %v867 = vpop.f32.mrb[0].mxu0
    %868 = vmatprep.mubr.f32.mxu0 0.0
    %869 = vmatmul.mubr.f32.gmra.mrb[0].mxu0 %v463
    %v870 = vpop.f32.mrb[0].mxu0
    %v871 = vadd.f32 %v702, %v870
    %v872 = vpop.f32.mrb[0].mxu0
    %873 = vmatprep.mubr.f32.mxu0 0.0
    %874 = vmatmul.mubr.f32.gmra.mrb[0].mxu0 %v468
    %v875 = vpop.f32.mrb[0].mxu0
    %v876 = vadd.f32 %v702, %v875
    %v877 = vpop.f32.mrb[0].mxu0
    %878 = vmatprep.mubr.f32.mxu0 0.0
    %879 = vmatmul.mubr.f32.gmra.mrb[0].mxu0 %v473
    %v880 = vpop.f32.mrb[0].mxu0
    %v881 = vadd.f32 %v702, %v880
    %v882 = vpop.f32.mrb[0].mxu0
    %883 = vmatprep.mubr.f32.mxu0 0.0
    %884 = vmatmul.mubr.f32.gmra.mrb[0].mxu0 %v478
    %v885 = vpop.f32.mrb[0].mxu0
    %v886 = vadd.f32 %v702, %v885
    %v887 = vpop.f32.mrb[0].mxu0
    %888 = vmatprep.mubr.f32.mxu0 0.0
    %889 = vmatmul.mubr.f32.gmra.mrb[0].mxu0 %v483
    %v890 = vpop.f32.mrb[0].mxu0
    %v891 = vadd.f32 %v702, %v890
    %v892 = vpop.f32.mrb[0].mxu0
    %893 = vmatprep.mubr.f32.mxu0 0.0
    %894 = vmatmul.mubr.f32.gmra.mrb[0].mxu0 %v488
    %v895 = vpop.f32.mrb[0].mxu0
    %v896 = vadd.f32 %v702, %v895
    %v897 = vpop.f32.mrb[0].mxu0
    %898 = vmatprep.mubr.f32.mxu0 0.0
    %899 = vmatmul.mubr.f32.gmra.mrb[0].mxu0 %v493
    %v900 = vpop.f32.mrb[0].mxu0
    %v901 = vadd.f32 %v702, %v900
    %v902 = vpop.f32.mrb[0].mxu0
    %903 = vmatprep.mubr.f32.mxu0 0.0
    %904 = vmatmul.mubr.f32.gmra.mrb[0].mxu0 %v498
    %v905 = vpop.f32.mrb[0].mxu0
    %v906 = vadd.f32 %v702, %v905
    %v907 = vpop.f32.mrb[0].mxu0
    %908 = vmatprep.mubr.f32.mxu0 0.0
    %909 = vmatmul.mubr.f32.gmra.mrb[0].mxu0 %v503
    %v910 = vpop.f32.mrb[0].mxu0
    %v911 = vadd.f32 %v702, %v910
    %v912 = vpop.f32.mrb[0].mxu0
    %913 = vmatprep.mubr.f32.mxu0 0.0
    %914 = vmatmul.mubr.f32.gmra.mrb[0].mxu0 %v508
    %v915 = vpop.f32.mrb[0].mxu0
    %v916 = vadd.f32 %v702, %v915
    %v917 = vpop.f32.mrb[0].mxu0
    %918 = vmatprep.mubr.f32.mxu0 0.0
    %919 = vmatmul.mubr.f32.gmra.mrb[0].mxu0 %v513
    %v920 = vpop.f32.mrb[0].mxu0
    %v921 = vadd.f32 %v702, %v920
    %v922 = vpop.f32.mrb[0].mxu0
    %923 = vmatprep.mubr.f32.mxu0 0.0
    %924 = vmatmul.mubr.f32.gmra.mrb[0].mxu0 %v518
    %v925 = vpop.f32.mrb[0].mxu0
    %v926 = vadd.f32 %v702, %v925
    %v927 = vpop.f32.mrb[0].mxu0
    %928 = vmatprep.mubr.f32.mxu0 0.0
    %929 = vmatmul.mubr.f32.gmra.mrb[0].mxu0 %v523
    %v930 = vpop.f32.mrb[0].mxu0
    %v931 = vadd.f32 %v702, %v930
    %v932 = vpop.f32.mrb[0].mxu0
    %933 = vmatprep.mubr.f32.mxu0 0.0
    %934 = vmatmul.mubr.f32.gmra.mrb[0].mxu0 %v528
    %v935 = vpop.f32.mrb[0].mxu0
    %v936 = vadd.f32 %v702, %v935
    %v937 = vpop.f32.mrb[0].mxu0
    %938 = vmatprep.mubr.f32.mxu0 0.0
    %939 = vmatmul.mubr.f32.gmra.mrb[0].mxu0 %v533
    %v940 = vpop.f32.mrb[0].mxu0
    %v941 = vadd.f32 %v702, %v940
    %v942 = vpop.f32.mrb[0].mxu0
    %943 = vmatprep.mubr.f32.mxu0 0.0
    %944 = vmatmul.mubr.f32.gmra.mrb[0].mxu0 %v538
    %v945 = vpop.f32.mrb[0].mxu0
    %v946 = vadd.f32 %v702, %v945
    %v947 = vpop.f32.mrb[0].mxu0
    %948 = vmatprep.mubr.f32.mxu0 0.0
    %949 = vmatmul.mubr.f32.gmra.mrb[0].mxu0 %v543
    %v950 = vpop.f32.mrb[0].mxu0
    %v951 = vadd.f32 %v702, %v950
    %v952 = vpop.f32.mrb[0].mxu0
    %953 = vmatprep.mubr.f32.mxu0 0.0
    %954 = vmatmul.mubr.f32.gmra.mrb[0].mxu0 %v548
    %v955 = vpop.f32.mrb[0].mxu0
    %v956 = vadd.f32 %v702, %v955
    %v957 = vpop.f32.mrb[0].mxu0
    %958 = vmatprep.mubr.f32.mxu0 0.0
    %959 = vmatmul.mubr.f32.gmra.mrb[0].mxu0 %v553
    %v960 = vpop.f32.mrb[0].mxu0
    %v961 = vadd.f32 %v702, %v960
    %v962 = vpop.f32.mrb[0].mxu0
    %963 = vmatprep.mubr.f32.mxu0 0.0
    %964 = vmatmul.mubr.f32.gmra.mrb[0].mxu0 %v558
    %v965 = vpop.f32.mrb[0].mxu0
    %v966 = vadd.f32 %v702, %v965
    %v967 = vpop.f32.mrb[0].mxu0
    %968 = vmatprep.mubr.f32.mxu0 0.0
    %969 = vmatmul.mubr.f32.gmra.mrb[0].mxu0 %v563
    %v970 = vpop.f32.mrb[0].mxu0
    %v971 = vadd.f32 %v702, %v970
    %v972 = vpop.f32.mrb[0].mxu0
    %973 = vmatprep.mubr.f32.mxu0 0.0
    %974 = vmatmul.mubr.f32.gmra.mrb[0].mxu0 %v568
    %v975 = vpop.f32.mrb[0].mxu0
    %v976 = vadd.f32 %v702, %v975
    %v977 = vpop.f32.mrb[0].mxu0
    %978 = vmatprep.mubr.f32.mxu0 0.0
    %979 = vmatmul.mubr.f32.gmra.mrb[0].mxu0 %v573
    %v980 = vpop.f32.mrb[0].mxu0
    %v981 = vadd.f32 %v702, %v980
    %v982 = vpop.f32.mrb[0].mxu0
    %983 = vmatprep.mubr.f32.mxu0 0.0
    %984 = vmatmul.mubr.f32.gmra.mrb[0].mxu0 %v578
    %v985 = vpop.f32.mrb[0].mxu0
    %v986 = vadd.f32 %v702, %v985
    %v987 = vpop.f32.mrb[0].mxu0
    %988 = vmatprep.mubr.f32.mxu0 0.0
    %989 = vmatmul.mubr.f32.gmra.mrb[0].mxu0 %v583
    %v990 = vpop.f32.mrb[0].mxu0
    %v991 = vadd.f32 %v702, %v990
    %v992 = vpop.f32.mrb[0].mxu0
    %993 = vmatprep.mubr.f32.mxu0 0.0
    %994 = vmatmul.mubr.f32.gmra.mrb[0].mxu0 %v588
    %v995 = vpop.f32.mrb[0].mxu0
    %v996 = vadd.f32 %v702, %v995
    %v997 = vpop.f32.mrb[0].mxu0
    %998 = vmatprep.mubr.f32.mxu0 0.0
    %999 = vmatmul.mubr.f32.gmra.mrb[0].mxu0 %v593
    %v1000 = vpop.f32.mrb[0].mxu0
    %v1001 = vadd.f32 %v702, %v1000
    %v1002 = vpop.f32.mrb[0].mxu0
    %1003 = vmatprep.mubr.f32.mxu0 0.0
    %1004 = vmatmul.mubr.f32.gmra.mrb[0].mxu0 %v598
    %v1005 = vpop.f32.mrb[0].mxu0
    %v1006 = vadd.f32 %v702, %v1005
    %v1007 = vpop.f32.mrb[0].mxu0
    %1008 = vmatprep.mubr.f32.mxu0 0.0
    %1009 = vmatmul.mubr.f32.gmra.mrb[0].mxu0 %v603
    %v1010 = vpop.f32.mrb[0].mxu0
    %v1011 = vadd.f32 %v702, %v1010
    %v1012 = vpop.f32.mrb[0].mxu0
    %1013 = vmatprep.mubr.f32.mxu0 0.0
    %1014 = vmatmul.mubr.f32.gmra.mrb[0].mxu0 %v608
    %v1015 = vpop.f32.mrb[0].mxu0
    %v1016 = vadd.f32 %v702, %v1015
    %v1017 = vpop.f32.mrb[0].mxu0
    %1018 = vmatprep.mubr.f32.mxu0 0.0
    %1019 = vmatmul.mubr.f32.gmra.mrb[0].mxu0 %v613
    %v1020 = vpop.f32.mrb[0].mxu0
    %v1021 = vadd.f32 %v702, %v1020
    %v1022 = vpop.f32.mrb[0].mxu0
    %1023 = vmatprep.mubr.f32.mxu0 0.0
    %1024 = vmatmul.mubr.f32.gmra.mrb[0].mxu0 %v618
    %v1025 = vpop.f32.mrb[0].mxu0
    %v1026 = vadd.f32 %v702, %v1025
    %v1027 = vpop.f32.mrb[0].mxu0
    %1028 = vmatprep.mubr.f32.mxu0 0.0
    %1029 = vmatmul.mubr.f32.gmra.mrb[0].mxu0 %v623
    %v1030 = vpop.f32.mrb[0].mxu0
    %v1031 = vadd.f32 %v702, %v1030
    %v1032 = vpop.f32.mrb[0].mxu0
    %1033 = vmatprep.mubr.f32.mxu0 0.0
    %1034 = vmatmul.mubr.f32.gmra.mrb[0].mxu0 %v628
    %v1035 = vpop.f32.mrb[0].mxu0
    %v1036 = vadd.f32 %v702, %v1035
    %v1037 = vpop.f32.mrb[0].mxu0
    %1038 = vmatprep.mubr.f32.mxu0 0.0
    %1039 = vmatmul.mubr.f32.gmra.mrb[0].mxu0 %v633
    %v1040 = vpop.f32.mrb[0].mxu0
    %v1041 = vadd.f32 %v702, %v1040
    %v1042 = vpop.f32.mrb[0].mxu0
    %1043 = vmatprep.mubr.f32.mxu0 0.0
    %1044 = vmatmul.mubr.f32.gmra.mrb[0].mxu0 %v638
    %v1045 = vpop.f32.mrb[0].mxu0
    %v1046 = vadd.f32 %v702, %v1045
    %v1047 = vpop.f32.mrb[0].mxu0
    %1048 = vmatprep.mubr.f32.mxu0 0.0
    %1049 = vmatmul.mubr.f32.gmra.mrb[0].mxu0 %v643
    %v1050 = vpop.f32.mrb[0].mxu0
    %v1051 = vadd.f32 %v702, %v1050
    %v1052 = vpop.f32.mrb[0].mxu0
    %1053 = vmatprep.mubr.f32.mxu0 0.0
    %1054 = vmatmul.mubr.f32.gmra.mrb[0].mxu0 %v648
    %v1055 = vpop.f32.mrb[0].mxu0
    %v1056 = vadd.f32 %v702, %v1055
    %v1057 = vpop.f32.mrb[0].mxu0
    %1058 = vmatprep.mubr.f32.mxu0 0.0
    %1059 = vmatmul.mubr.f32.gmra.mrb[0].mxu0 %v653
    %v1060 = vpop.f32.mrb[0].mxu0
    %v1061 = vadd.f32 %v702, %v1060
    %v1062 = vpop.f32.mrb[0].mxu0
    %1063 = vmatprep.mubr.f32.mxu0 0.0
    %1064 = vmatmul.mubr.f32.gmra.mrb[0].mxu0 %v658
    %v1065 = vpop.f32.mrb[0].mxu0
    %v1066 = vadd.f32 %v702, %v1065
    %v1067 = vpop.f32.mrb[0].mxu0
    %1068 = vmatprep.mubr.f32.mxu0 0.0
    %1069 = vmatmul.mubr.f32.gmra.mrb[0].mxu0 %v663
    %v1070 = vpop.f32.mrb[0].mxu0
    %v1071 = vadd.f32 %v702, %v1070
    %v1072 = vpop.f32.mrb[0].mxu0
    %1073 = vmatprep.mubr.f32.mxu0 0.0
    %1074 = vmatmul.mubr.f32.gmra.mrb[0].mxu0 %v668
    %v1075 = vpop.f32.mrb[0].mxu0
    %v1076 = vadd.f32 %v702, %v1075
    %v1077 = vpop.f32.mrb[0].mxu0
    %1078 = vmatprep.mubr.f32.mxu0 0.0
    %1079 = vmatmul.mubr.f32.gmra.mrb[0].mxu0 %v673
    %v1080 = vpop.f32.mrb[0].mxu0
    %v1081 = vadd.f32 %v702, %v1080
    %v1082 = vpop.f32.mrb[0].mxu0
    %1083 = vmatprep.mubr.f32.mxu0 0.0
    %1084 = vmatmul.mubr.f32.gmra.mrb[0].mxu0 %v678
    %v1085 = vpop.f32.mrb[0].mxu0
    %v1086 = vadd.f32 %v702, %v1085
    %v1087 = vpop.f32.mrb[0].mxu0
    %1088 = vdwg.mxu0
    %v1089 = vld [vmem:[%s5] sm:$0xff]
    %v1090 = vld [vmem:[%s5 + $0x8] sm:$0xff]
    %v1091 = vld [vmem:[%s5 + $0x10] sm:$0xff]
    %v1092 = vld [vmem:[%s5 + $0x18] sm:$0xff]
    %v1093 = vld [vmem:[%s5 + $0x20] sm:$0xff]
    %v1094 = vld [vmem:[%s5 + $0x28] sm:$0xff]
    %v1095 = vld [vmem:[%s5 + $0x30] sm:$0xff]
    %v1096 = vld [vmem:[%s5 + $0x38] sm:$0xff]
    %v1097 = vld [vmem:[%s5 + $0x40] sm:$0xff]
    %v1098 = vld [vmem:[%s5 + $0x48] sm:$0xff]
    %v1099 = vld [vmem:[%s5 + $0x50] sm:$0xff]
    %v1100 = vld [vmem:[%s5 + $0x58] sm:$0xff]
    %v1101 = vld [vmem:[%s5 + $0x60] sm:$0xff]
    %v1102 = vld [vmem:[%s5 + $0x68] sm:$0xff]
    %v1103 = vld [vmem:[%s5 + $0x70] sm:$0xff]
    %v1104 = vld [vmem:[%s5 + $0x78] sm:$0xff]
    %v1105 = vld [vmem:[%s6] sm:$0x1]
    %v1107 = vlaneseq
    %v1108 = vshrl.u32 %v1107, 7
    %v1109 = vsub.s32 0, %v1108
    %v1110 = vrot.slane %v1105, %v1109
    %1112 = vmatprep.subr.mxu0 0.0
    %1113 = vmatpush1.msra.mxu0 %v1089
    %1114 = vmatprep.subr.mxu0 0.0
    %1115 = vmatpush1.msra.mxu0 %v1090
    %1116 = vmatprep.subr.mxu0 0.0
    %1117 = vmatpush1.msra.mxu0 %v1091
    %1118 = vmatprep.subr.mxu0 0.0
    %1119 = vmatpush1.msra.mxu0 %v1092
    %1120 = vmatprep.subr.mxu0 0.0
    %1121 = vmatpush1.msra.mxu0 %v1093
    %1122 = vmatprep.subr.mxu0 0.0
    %1123 = vmatpush1.msra.mxu0 %v1094
    %1124 = vmatprep.subr.mxu0 0.0
    %1125 = vmatpush1.msra.mxu0 %v1095
    %1126 = vmatprep.subr.mxu0 0.0
    %1127 = vmatpush1.msra.mxu0 %v1096
    %1128 = vmatprep.subr.mxu0 0.0
    %1129 = vmatpush1.msra.mxu0 %v1097
    %1130 = vmatprep.subr.mxu0 0.0
    %1131 = vmatpush1.msra.mxu0 %v1098
    %1132 = vmatprep.subr.mxu0 0.0
    %1133 = vmatpush1.msra.mxu0 %v1099
    %1134 = vmatprep.subr.mxu0 0.0
    %1135 = vmatpush1.msra.mxu0 %v1100
    %1136 = vmatprep.subr.mxu0 0.0
    %1137 = vmatpush1.msra.mxu0 %v1101
    %1138 = vmatprep.subr.mxu0 0.0
    %1139 = vmatpush1.msra.mxu0 %v1102
    %1140 = vmatprep.subr.mxu0 0.0
    %1141 = vmatpush1.msra.mxu0 %v1103
    %1142 = vmatprep.subr.mxu0 0.0
    %1143 = vmatpush1.msra.mxu0 %v1104
    %1144 = vmatprep.subr.mxu0 0.0
    %1145 = vmatpush1.msra.mxu0 0.0
    %1146 = vmatprep.subr.mxu0 0.0
    %1147 = vmatpush1.msra.mxu0 0.0
    %1148 = vmatprep.subr.mxu0 0.0
    %1149 = vmatpush1.msra.mxu0 0.0
    %1150 = vmatprep.subr.mxu0 0.0
    %1151 = vmatpush1.msra.mxu0 0.0
    %1152 = vmatprep.subr.mxu0 0.0
    %1153 = vmatpush1.msra.mxu0 0.0
    %1154 = vmatprep.subr.mxu0 0.0
    %1155 = vmatpush1.msra.mxu0 0.0
    %1156 = vmatprep.subr.mxu0 0.0
    %1157 = vmatpush1.msra.mxu0 0.0
    %1158 = vmatprep.subr.mxu0 0.0
    %1159 = vmatpush1.msra.mxu0 0.0
    %1160 = vmatprep.subr.mxu0 0.0
    %1161 = vmatpush1.msra.mxu0 0.0
    %1162 = vmatprep.subr.mxu0 0.0
    %1163 = vmatpush1.msra.mxu0 0.0
    %1164 = vmatprep.subr.mxu0 0.0
    %1165 = vmatpush1.msra.mxu0 0.0
    %1166 = vmatprep.subr.mxu0 0.0
    %1167 = vmatpush1.msra.mxu0 0.0
    %1168 = vmatprep.subr.mxu0 0.0
    %1169 = vmatpush1.msra.mxu0 0.0
    %1170 = vmatprep.subr.mxu0 0.0
    %1171 = vmatpush1.msra.mxu0 0.0
    %1172 = vmatprep.subr.mxu0 0.0
    %1173 = vmatpush1.msra.mxu0 0.0
    %1174 = vmatprep.subr.mxu0 0.0
    %1175 = vmatpush1.msra.mxu0 0.0
    %1176 = vmatprep.mubr.f32.mxu0 0.0
    %1177 = vmatmul.mubr.f32.gmra.mrb[0].mxu0 %v771
    %v1178 = vpop.f32.mrb[0].mxu0
    %v1179 = vadd.f32 %v1110, %v1178
    %v1180 = vpop.f32.mrb[0].mxu0
    %1181 = vmatprep.mubr.f32.mxu0 0.0
    %1182 = vmatmul.mubr.f32.gmra.mrb[0].mxu0 %v776
    %v1183 = vpop.f32.mrb[0].mxu0
    %v1184 = vadd.f32 %v1110, %v1183
    %v1185 = vpop.f32.mrb[0].mxu0
    %1186 = vmatprep.mubr.f32.mxu0 0.0
    %1187 = vmatmul.mubr.f32.gmra.mrb[0].mxu0 %v781
    %v1188 = vpop.f32.mrb[0].mxu0
    %v1189 = vadd.f32 %v1110, %v1188
    %v1190 = vpop.f32.mrb[0].mxu0
    %1191 = vmatprep.mubr.f32.mxu0 0.0
    %1192 = vmatmul.mubr.f32.gmra.mrb[0].mxu0 %v786
    %v1193 = vpop.f32.mrb[0].mxu0
    %v1194 = vadd.f32 %v1110, %v1193
    %v1195 = vpop.f32.mrb[0].mxu0
    %1196 = vmatprep.mubr.f32.mxu0 0.0
    %1197 = vmatmul.mubr.f32.gmra.mrb[0].mxu0 %v791
    %v1198 = vpop.f32.mrb[0].mxu0
    %v1199 = vadd.f32 %v1110, %v1198
    %v1200 = vpop.f32.mrb[0].mxu0
    %1201 = vmatprep.mubr.f32.mxu0 0.0
    %1202 = vmatmul.mubr.f32.gmra.mrb[0].mxu0 %v796
    %v1203 = vpop.f32.mrb[0].mxu0
    %v1204 = vadd.f32 %v1110, %v1203
    %v1205 = vpop.f32.mrb[0].mxu0
    %1206 = vmatprep.mubr.f32.mxu0 0.0
    %1207 = vmatmul.mubr.f32.gmra.mrb[0].mxu0 %v801
    %v1208 = vpop.f32.mrb[0].mxu0
    %v1209 = vadd.f32 %v1110, %v1208
    %v1210 = vpop.f32.mrb[0].mxu0
    %1211 = vmatprep.mubr.f32.mxu0 0.0
    %1212 = vmatmul.mubr.f32.gmra.mrb[0].mxu0 %v806
    %v1213 = vpop.f32.mrb[0].mxu0
    %v1214 = vadd.f32 %v1110, %v1213
    %v1215 = vpop.f32.mrb[0].mxu0
    %1216 = vmatprep.mubr.f32.mxu0 0.0
    %1217 = vmatmul.mubr.f32.gmra.mrb[0].mxu0 %v811
    %v1218 = vpop.f32.mrb[0].mxu0
    %v1219 = vadd.f32 %v1110, %v1218
    %v1220 = vpop.f32.mrb[0].mxu0
    %1221 = vmatprep.mubr.f32.mxu0 0.0
    %1222 = vmatmul.mubr.f32.gmra.mrb[0].mxu0 %v816
    %v1223 = vpop.f32.mrb[0].mxu0
    %v1224 = vadd.f32 %v1110, %v1223
    %v1225 = vpop.f32.mrb[0].mxu0
    %1226 = vmatprep.mubr.f32.mxu0 0.0
    %1227 = vmatmul.mubr.f32.gmra.mrb[0].mxu0 %v821
    %v1228 = vpop.f32.mrb[0].mxu0
    %v1229 = vadd.f32 %v1110, %v1228
    %v1230 = vpop.f32.mrb[0].mxu0
    %1231 = vmatprep.mubr.f32.mxu0 0.0
    %1232 = vmatmul.mubr.f32.gmra.mrb[0].mxu0 %v826
    %v1233 = vpop.f32.mrb[0].mxu0
    %v1234 = vadd.f32 %v1110, %v1233
    %v1235 = vpop.f32.mrb[0].mxu0
    %1236 = vmatprep.mubr.f32.mxu0 0.0
    %1237 = vmatmul.mubr.f32.gmra.mrb[0].mxu0 %v831
    %v1238 = vpop.f32.mrb[0].mxu0
    %v1239 = vadd.f32 %v1110, %v1238
    %v1240 = vpop.f32.mrb[0].mxu0
    %1241 = vmatprep.mubr.f32.mxu0 0.0
    %1242 = vmatmul.mubr.f32.gmra.mrb[0].mxu0 %v836
    %v1243 = vpop.f32.mrb[0].mxu0
    %v1244 = vadd.f32 %v1110, %v1243
    %v1245 = vpop.f32.mrb[0].mxu0
    %1246 = vmatprep.mubr.f32.mxu0 0.0
    %1247 = vmatmul.mubr.f32.gmra.mrb[0].mxu0 %v841
    %v1248 = vpop.f32.mrb[0].mxu0
    %v1249 = vadd.f32 %v1110, %v1248
    %v1250 = vpop.f32.mrb[0].mxu0
    %1251 = vmatprep.mubr.f32.mxu0 0.0
    %1252 = vmatmul.mubr.f32.gmra.mrb[0].mxu0 %v846
    %v1253 = vpop.f32.mrb[0].mxu0
    %v1254 = vadd.f32 %v1110, %v1253
    %v1255 = vpop.f32.mrb[0].mxu0
    %1256 = vmatprep.mubr.f32.mxu0 0.0
    %1257 = vmatmul.mubr.f32.gmra.mrb[0].mxu0 %v851
    %v1258 = vpop.f32.mrb[0].mxu0
    %v1259 = vadd.f32 %v1110, %v1258
    %v1260 = vpop.f32.mrb[0].mxu0
    %1261 = vmatprep.mubr.f32.mxu0 0.0
    %1262 = vmatmul.mubr.f32.gmra.mrb[0].mxu0 %v856
    %v1263 = vpop.f32.mrb[0].mxu0
    %v1264 = vadd.f32 %v1110, %v1263
    %v1265 = vpop.f32.mrb[0].mxu0
    %1266 = vmatprep.mubr.f32.mxu0 0.0
    %1267 = vmatmul.mubr.f32.gmra.mrb[0].mxu0 %v861
    %v1268 = vpop.f32.mrb[0].mxu0
    %v1269 = vadd.f32 %v1110, %v1268
    %v1270 = vpop.f32.mrb[0].mxu0
    %1271 = vmatprep.mubr.f32.mxu0 0.0
    %1272 = vmatmul.mubr.f32.gmra.mrb[0].mxu0 %v866
    %v1273 = vpop.f32.mrb[0].mxu0
    %v1274 = vadd.f32 %v1110, %v1273
    %v1275 = vpop.f32.mrb[0].mxu0
    %1276 = vmatprep.mubr.f32.mxu0 0.0
    %1277 = vmatmul.mubr.f32.gmra.mrb[0].mxu0 %v871
    %v1278 = vpop.f32.mrb[0].mxu0
    %v1279 = vadd.f32 %v1110, %v1278
    %v1280 = vpop.f32.mrb[0].mxu0
    %1281 = vmatprep.mubr.f32.mxu0 0.0
    %1282 = vmatmul.mubr.f32.gmra.mrb[0].mxu0 %v876
    %v1283 = vpop.f32.mrb[0].mxu0
    %v1284 = vadd.f32 %v1110, %v1283
    %v1285 = vpop.f32.mrb[0].mxu0
    %1286 = vmatprep.mubr.f32.mxu0 0.0
    %1287 = vmatmul.mubr.f32.gmra.mrb[0].mxu0 %v881
    %v1288 = vpop.f32.mrb[0].mxu0
    %v1289 = vadd.f32 %v1110, %v1288
    %v1290 = vpop.f32.mrb[0].mxu0
    %1291 = vmatprep.mubr.f32.mxu0 0.0
    %1292 = vmatmul.mubr.f32.gmra.mrb[0].mxu0 %v886
    %v1293 = vpop.f32.mrb[0].mxu0
    %v1294 = vadd.f32 %v1110, %v1293
    %v1295 = vpop.f32.mrb[0].mxu0
    %1296 = vmatprep.mubr.f32.mxu0 0.0
    %1297 = vmatmul.mubr.f32.gmra.mrb[0].mxu0 %v891
    %v1298 = vpop.f32.mrb[0].mxu0
    %v1299 = vadd.f32 %v1110, %v1298
    %v1300 = vpop.f32.mrb[0].mxu0
    %1301 = vmatprep.mubr.f32.mxu0 0.0
    %1302 = vmatmul.mubr.f32.gmra.mrb[0].mxu0 %v896
    %v1303 = vpop.f32.mrb[0].mxu0
    %v1304 = vadd.f32 %v1110, %v1303
    %v1305 = vpop.f32.mrb[0].mxu0
    %1306 = vmatprep.mubr.f32.mxu0 0.0
    %1307 = vmatmul.mubr.f32.gmra.mrb[0].mxu0 %v901
    %v1308 = vpop.f32.mrb[0].mxu0
    %v1309 = vadd.f32 %v1110, %v1308
    %v1310 = vpop.f32.mrb[0].mxu0
    %1311 = vmatprep.mubr.f32.mxu0 0.0
    %1312 = vmatmul.mubr.f32.gmra.mrb[0].mxu0 %v906
    %v1313 = vpop.f32.mrb[0].mxu0
    %v1314 = vadd.f32 %v1110, %v1313
    %v1315 = vpop.f32.mrb[0].mxu0
    %1316 = vmatprep.mubr.f32.mxu0 0.0
    %1317 = vmatmul.mubr.f32.gmra.mrb[0].mxu0 %v911
    %v1318 = vpop.f32.mrb[0].mxu0
    %v1319 = vadd.f32 %v1110, %v1318
    %v1320 = vpop.f32.mrb[0].mxu0
    %1321 = vmatprep.mubr.f32.mxu0 0.0
    %1322 = vmatmul.mubr.f32.gmra.mrb[0].mxu0 %v916
    %v1323 = vpop.f32.mrb[0].mxu0
    %v1324 = vadd.f32 %v1110, %v1323
    %v1325 = vpop.f32.mrb[0].mxu0
    %1326 = vmatprep.mubr.f32.mxu0 0.0
    %1327 = vmatmul.mubr.f32.gmra.mrb[0].mxu0 %v921
    %v1328 = vpop.f32.mrb[0].mxu0
    %v1329 = vadd.f32 %v1110, %v1328
    %v1330 = vpop.f32.mrb[0].mxu0
    %1331 = vmatprep.mubr.f32.mxu0 0.0
    %1332 = vmatmul.mubr.f32.gmra.mrb[0].mxu0 %v926
    %v1333 = vpop.f32.mrb[0].mxu0
    %v1334 = vadd.f32 %v1110, %v1333
    %v1335 = vpop.f32.mrb[0].mxu0
    %1336 = vmatprep.mubr.f32.mxu0 0.0
    %1337 = vmatmul.mubr.f32.gmra.mrb[0].mxu0 %v931
    %v1338 = vpop.f32.mrb[0].mxu0
    %v1339 = vadd.f32 %v1110, %v1338
    %v1340 = vpop.f32.mrb[0].mxu0
    %1341 = vmatprep.mubr.f32.mxu0 0.0
    %1342 = vmatmul.mubr.f32.gmra.mrb[0].mxu0 %v936
    %v1343 = vpop.f32.mrb[0].mxu0
    %v1344 = vadd.f32 %v1110, %v1343
    %v1345 = vpop.f32.mrb[0].mxu0
    %1346 = vmatprep.mubr.f32.mxu0 0.0
    %1347 = vmatmul.mubr.f32.gmra.mrb[0].mxu0 %v941
    %v1348 = vpop.f32.mrb[0].mxu0
    %v1349 = vadd.f32 %v1110, %v1348
    %v1350 = vpop.f32.mrb[0].mxu0
    %1351 = vmatprep.mubr.f32.mxu0 0.0
    %1352 = vmatmul.mubr.f32.gmra.mrb[0].mxu0 %v946
    %v1353 = vpop.f32.mrb[0].mxu0
    %v1354 = vadd.f32 %v1110, %v1353
    %v1355 = vpop.f32.mrb[0].mxu0
    %1356 = vmatprep.mubr.f32.mxu0 0.0
    %1357 = vmatmul.mubr.f32.gmra.mrb[0].mxu0 %v951
    %v1358 = vpop.f32.mrb[0].mxu0
    %v1359 = vadd.f32 %v1110, %v1358
    %v1360 = vpop.f32.mrb[0].mxu0
    %1361 = vmatprep.mubr.f32.mxu0 0.0
    %1362 = vmatmul.mubr.f32.gmra.mrb[0].mxu0 %v956
    %v1363 = vpop.f32.mrb[0].mxu0
    %v1364 = vadd.f32 %v1110, %v1363
    %v1365 = vpop.f32.mrb[0].mxu0
    %1366 = vmatprep.mubr.f32.mxu0 0.0
    %1367 = vmatmul.mubr.f32.gmra.mrb[0].mxu0 %v961
    %v1368 = vpop.f32.mrb[0].mxu0
    %v1369 = vadd.f32 %v1110, %v1368
    %v1370 = vpop.f32.mrb[0].mxu0
    %1371 = vmatprep.mubr.f32.mxu0 0.0
    %1372 = vmatmul.mubr.f32.gmra.mrb[0].mxu0 %v966
    %v1373 = vpop.f32.mrb[0].mxu0
    %v1374 = vadd.f32 %v1110, %v1373
    %v1375 = vpop.f32.mrb[0].mxu0
    %1376 = vmatprep.mubr.f32.mxu0 0.0
    %1377 = vmatmul.mubr.f32.gmra.mrb[0].mxu0 %v971
    %v1378 = vpop.f32.mrb[0].mxu0
    %v1379 = vadd.f32 %v1110, %v1378
    %v1380 = vpop.f32.mrb[0].mxu0
    %1381 = vmatprep.mubr.f32.mxu0 0.0
    %1382 = vmatmul.mubr.f32.gmra.mrb[0].mxu0 %v976
    %v1383 = vpop.f32.mrb[0].mxu0
    %v1384 = vadd.f32 %v1110, %v1383
    %v1385 = vpop.f32.mrb[0].mxu0
    %1386 = vmatprep.mubr.f32.mxu0 0.0
    %1387 = vmatmul.mubr.f32.gmra.mrb[0].mxu0 %v981
    %v1388 = vpop.f32.mrb[0].mxu0
    %v1389 = vadd.f32 %v1110, %v1388
    %v1390 = vpop.f32.mrb[0].mxu0
    %1391 = vmatprep.mubr.f32.mxu0 0.0
    %1392 = vmatmul.mubr.f32.gmra.mrb[0].mxu0 %v986
    %v1393 = vpop.f32.mrb[0].mxu0
    %v1394 = vadd.f32 %v1110, %v1393
    %v1395 = vpop.f32.mrb[0].mxu0
    %1396 = vmatprep.mubr.f32.mxu0 0.0
    %1397 = vmatmul.mubr.f32.gmra.mrb[0].mxu0 %v991
    %v1398 = vpop.f32.mrb[0].mxu0
    %v1399 = vadd.f32 %v1110, %v1398
    %v1400 = vpop.f32.mrb[0].mxu0
    %1401 = vmatprep.mubr.f32.mxu0 0.0
    %1402 = vmatmul.mubr.f32.gmra.mrb[0].mxu0 %v996
    %v1403 = vpop.f32.mrb[0].mxu0
    %v1404 = vadd.f32 %v1110, %v1403
    %v1405 = vpop.f32.mrb[0].mxu0
    %1406 = vmatprep.mubr.f32.mxu0 0.0
    %1407 = vmatmul.mubr.f32.gmra.mrb[0].mxu0 %v1001
    %v1408 = vpop.f32.mrb[0].mxu0
    %v1409 = vadd.f32 %v1110, %v1408
    %v1410 = vpop.f32.mrb[0].mxu0
    %1411 = vmatprep.mubr.f32.mxu0 0.0
    %1412 = vmatmul.mubr.f32.gmra.mrb[0].mxu0 %v1006
    %v1413 = vpop.f32.mrb[0].mxu0
    %v1414 = vadd.f32 %v1110, %v1413
    %v1415 = vpop.f32.mrb[0].mxu0
    %1416 = vmatprep.mubr.f32.mxu0 0.0
    %1417 = vmatmul.mubr.f32.gmra.mrb[0].mxu0 %v1011
    %v1418 = vpop.f32.mrb[0].mxu0
    %v1419 = vadd.f32 %v1110, %v1418
    %v1420 = vpop.f32.mrb[0].mxu0
    %1421 = vmatprep.mubr.f32.mxu0 0.0
    %1422 = vmatmul.mubr.f32.gmra.mrb[0].mxu0 %v1016
    %v1423 = vpop.f32.mrb[0].mxu0
    %v1424 = vadd.f32 %v1110, %v1423
    %v1425 = vpop.f32.mrb[0].mxu0
    %1426 = vmatprep.mubr.f32.mxu0 0.0
    %1427 = vmatmul.mubr.f32.gmra.mrb[0].mxu0 %v1021
    %v1428 = vpop.f32.mrb[0].mxu0
    %v1429 = vadd.f32 %v1110, %v1428
    %v1430 = vpop.f32.mrb[0].mxu0
    %1431 = vmatprep.mubr.f32.mxu0 0.0
    %1432 = vmatmul.mubr.f32.gmra.mrb[0].mxu0 %v1026
    %v1433 = vpop.f32.mrb[0].mxu0
    %v1434 = vadd.f32 %v1110, %v1433
    %v1435 = vpop.f32.mrb[0].mxu0
    %1436 = vmatprep.mubr.f32.mxu0 0.0
    %1437 = vmatmul.mubr.f32.gmra.mrb[0].mxu0 %v1031
    %v1438 = vpop.f32.mrb[0].mxu0
    %v1439 = vadd.f32 %v1110, %v1438
    %v1440 = vpop.f32.mrb[0].mxu0
    %1441 = vmatprep.mubr.f32.mxu0 0.0
    %1442 = vmatmul.mubr.f32.gmra.mrb[0].mxu0 %v1036
    %v1443 = vpop.f32.mrb[0].mxu0
    %v1444 = vadd.f32 %v1110, %v1443
    %v1445 = vpop.f32.mrb[0].mxu0
    %1446 = vmatprep.mubr.f32.mxu0 0.0
    %1447 = vmatmul.mubr.f32.gmra.mrb[0].mxu0 %v1041
    %v1448 = vpop.f32.mrb[0].mxu0
    %v1449 = vadd.f32 %v1110, %v1448
    %v1450 = vpop.f32.mrb[0].mxu0
    %1451 = vmatprep.mubr.f32.mxu0 0.0
    %1452 = vmatmul.mubr.f32.gmra.mrb[0].mxu0 %v1046
    %v1453 = vpop.f32.mrb[0].mxu0
    %v1454 = vadd.f32 %v1110, %v1453
    %v1455 = vpop.f32.mrb[0].mxu0
    %1456 = vmatprep.mubr.f32.mxu0 0.0
    %1457 = vmatmul.mubr.f32.gmra.mrb[0].mxu0 %v1051
    %v1458 = vpop.f32.mrb[0].mxu0
    %v1459 = vadd.f32 %v1110, %v1458
    %v1460 = vpop.f32.mrb[0].mxu0
    %1461 = vmatprep.mubr.f32.mxu0 0.0
    %1462 = vmatmul.mubr.f32.gmra.mrb[0].mxu0 %v1056
    %v1463 = vpop.f32.mrb[0].mxu0
    %v1464 = vadd.f32 %v1110, %v1463
    %v1465 = vpop.f32.mrb[0].mxu0
    %1466 = vmatprep.mubr.f32.mxu0 0.0
    %1467 = vmatmul.mubr.f32.gmra.mrb[0].mxu0 %v1061
    %v1468 = vpop.f32.mrb[0].mxu0
    %v1469 = vadd.f32 %v1110, %v1468
    %v1470 = vpop.f32.mrb[0].mxu0
    %1471 = vmatprep.mubr.f32.mxu0 0.0
    %1472 = vmatmul.mubr.f32.gmra.mrb[0].mxu0 %v1066
    %v1473 = vpop.f32.mrb[0].mxu0
    %v1474 = vadd.f32 %v1110, %v1473
    %v1475 = vpop.f32.mrb[0].mxu0
    %1476 = vmatprep.mubr.f32.mxu0 0.0
    %1477 = vmatmul.mubr.f32.gmra.mrb[0].mxu0 %v1071
    %v1478 = vpop.f32.mrb[0].mxu0
    %v1479 = vadd.f32 %v1110, %v1478
    %v1480 = vpop.f32.mrb[0].mxu0
    %1481 = vmatprep.mubr.f32.mxu0 0.0
    %1482 = vmatmul.mubr.f32.gmra.mrb[0].mxu0 %v1076
    %v1483 = vpop.f32.mrb[0].mxu0
    %v1484 = vadd.f32 %v1110, %v1483
    %v1485 = vpop.f32.mrb[0].mxu0
    %1486 = vmatprep.mubr.f32.mxu0 0.0
    %1487 = vmatmul.mubr.f32.gmra.mrb[0].mxu0 %v1081
    %v1488 = vpop.f32.mrb[0].mxu0
    %v1489 = vadd.f32 %v1110, %v1488
    %v1490 = vpop.f32.mrb[0].mxu0
    %1491 = vmatprep.mubr.f32.mxu0 0.0
    %1492 = vmatmul.mubr.f32.gmra.mrb[0].mxu0 %v1086
    %v1493 = vpop.f32.mrb[0].mxu0
    %v1494 = vadd.f32 %v1110, %v1493
    %v1495 = vpop.f32.mrb[0].mxu0
    %1496 = vdwg.mxu0
    %1497 = vst [vmem:[#allocation2] sm:$0xff] %v1179
    %1498 = vst [vmem:[#allocation2 + $0x8] sm:$0xff] %v1184
    %1499 = vst [vmem:[#allocation2 + $0x10] sm:$0xff] %v1189
    %1500 = vst [vmem:[#allocation2 + $0x18] sm:$0xff] %v1194
    %1501 = vst [vmem:[#allocation2 + $0x20] sm:$0xff] %v1199
    %1502 = vst [vmem:[#allocation2 + $0x28] sm:$0xff] %v1204
    %1503 = vst [vmem:[#allocation2 + $0x30] sm:$0xff] %v1209
    %1504 = vst [vmem:[#allocation2 + $0x38] sm:$0xff] %v1214
    %1505 = vst [vmem:[#allocation2 + $0x40] sm:$0xff] %v1219
    %1506 = vst [vmem:[#allocation2 + $0x48] sm:$0xff] %v1224
    %1507 = vst [vmem:[#allocation2 + $0x50] sm:$0xff] %v1229
    %1508 = vst [vmem:[#allocation2 + $0x58] sm:$0xff] %v1234
    %1509 = vst [vmem:[#allocation2 + $0x60] sm:$0xff] %v1239
    %1510 = vst [vmem:[#allocation2 + $0x68] sm:$0xff] %v1244
    %1511 = vst [vmem:[#allocation2 + $0x70] sm:$0xff] %v1249
    %1512 = vst [vmem:[#allocation2 + $0x78] sm:$0xff] %v1254
    %1513 = vst [vmem:[#allocation2 + $0x80] sm:$0xff] %v1259
    %1514 = vst [vmem:[#allocation2 + $0x88] sm:$0xff] %v1264
    %1515 = vst [vmem:[#allocation2 + $0x90] sm:$0xff] %v1269
    %1516 = vst [vmem:[#allocation2 + $0x98] sm:$0xff] %v1274
    %1517 = vst [vmem:[#allocation2 + $0xa0] sm:$0xff] %v1279
    %1518 = vst [vmem:[#allocation2 + $0xa8] sm:$0xff] %v1284
    %1519 = vst [vmem:[#allocation2 + $0xb0] sm:$0xff] %v1289
    %1520 = vst [vmem:[#allocation2 + $0xb8] sm:$0xff] %v1294
    %1521 = vst [vmem:[#allocation2 + $0xc0] sm:$0xff] %v1299
    %1522 = vst [vmem:[#allocation2 + $0xc8] sm:$0xff] %v1304
    %1523 = vst [vmem:[#allocation2 + $0xd0] sm:$0xff] %v1309
    %1524 = vst [vmem:[#allocation2 + $0xd8] sm:$0xff] %v1314
    %1525 = vst [vmem:[#allocation2 + $0xe0] sm:$0xff] %v1319
    %1526 = vst [vmem:[#allocation2 + $0xe8] sm:$0xff] %v1324
    %1527 = vst [vmem:[#allocation2 + $0xf0] sm:$0xff] %v1329
    %1528 = vst [vmem:[#allocation2 + $0xf8] sm:$0xff] %v1334
    %1529 = vst [vmem:[#allocation2 + $0x100] sm:$0xff] %v1339
    %1530 = vst [vmem:[#allocation2 + $0x108] sm:$0xff] %v1344
    %1531 = vst [vmem:[#allocation2 + $0x110] sm:$0xff] %v1349
    %1532 = vst [vmem:[#allocation2 + $0x118] sm:$0xff] %v1354
    %1533 = vst [vmem:[#allocation2 + $0x120] sm:$0xff] %v1359
    %1534 = vst [vmem:[#allocation2 + $0x128] sm:$0xff] %v1364
    %1535 = vst [vmem:[#allocation2 + $0x130] sm:$0xff] %v1369
    %1536 = vst [vmem:[#allocation2 + $0x138] sm:$0xff] %v1374
    %1537 = vst [vmem:[#allocation2 + $0x140] sm:$0xff] %v1379
    %1538 = vst [vmem:[#allocation2 + $0x148] sm:$0xff] %v1384
    %1539 = vst [vmem:[#allocation2 + $0x150] sm:$0xff] %v1389
    %1540 = vst [vmem:[#allocation2 + $0x158] sm:$0xff] %v1394
    %1541 = vst [vmem:[#allocation2 + $0x160] sm:$0xff] %v1399
    %1542 = vst [vmem:[#allocation2 + $0x168] sm:$0xff] %v1404
    %1543 = vst [vmem:[#allocation2 + $0x170] sm:$0xff] %v1409
    %1544 = vst [vmem:[#allocation2 + $0x178] sm:$0xff] %v1414
    %1545 = vst [vmem:[#allocation2 + $0x180] sm:$0xff] %v1419
    %1546 = vst [vmem:[#allocation2 + $0x188] sm:$0xff] %v1424
    %1547 = vst [vmem:[#allocation2 + $0x190] sm:$0xff] %v1429
    %1548 = vst [vmem:[#allocation2 + $0x198] sm:$0xff] %v1434
    %1549 = vst [vmem:[#allocation2 + $0x1a0] sm:$0xff] %v1439
    %1550 = vst [vmem:[#allocation2 + $0x1a8] sm:$0xff] %v1444
    %1551 = vst [vmem:[#allocation2 + $0x1b0] sm:$0xff] %v1449
    %1552 = vst [vmem:[#allocation2 + $0x1b8] sm:$0xff] %v1454
    %1553 = vst [vmem:[#allocation2 + $0x1c0] sm:$0xff] %v1459
    %1554 = vst [vmem:[#allocation2 + $0x1c8] sm:$0xff] %v1464
    %1555 = vst [vmem:[#allocation2 + $0x1d0] sm:$0xff] %v1469
    %1556 = vst [vmem:[#allocation2 + $0x1d8] sm:$0xff] %v1474
    %1557 = vst [vmem:[#allocation2 + $0x1e0] sm:$0xff] %v1479
    %1558 = vst [vmem:[#allocation2 + $0x1e8] sm:$0xff] %v1484
    %1559 = vst [vmem:[#allocation2 + $0x1f0] sm:$0xff] %v1489
    %1560 = vst [vmem:[#allocation2 + $0x1f8] sm:$0xff] %v1494
    // Predicated region
    $region30: #{base_processor_forward.1} parent=1 // pred_check
      _
    $region31: #{base_processor_forward.1} parent=1 // pred_check_branch
      %1562 = sbr.rel (0) target = $region33
    $region32: #{base_processor_forward.1} parent=1 // pred_region
      %s1564 = ssub.s32 8192, 8192
      %1565 = vsyncadd [#allocation3], %s1564
      %s1566 = sshll.u32 [#allocation2], 4
      %s1567 = int_to_ptr.vmem [resolvable:$true] %s1566
      %1572 = dma.vmem_to_hbm [thread:$0]  %s1567, 8192, %s7, [#allocation3], 128, 128, 8
    $region33: #{base_processor_forward.1} parent=1 // pred_fallthru
      _
    // Predicated region
    $region34: #{base_processor_forward.1} parent=1 // pred_check
      _
    $region35: #{base_processor_forward.1} parent=1 // pred_check_branch
      %1574 = sbr.rel (0) target = $region37
    $region36: #{base_processor_forward.1} parent=1 // pred_region
      %1575 = dma.done [#allocation3], 8192
    $region37: #{base_processor_forward.1} parent=1 // pred_fallthru
      _
    %1576 = vsyncpa [#allocation3], 1

</llo_original>
